<compile_context>
chip_gen: v6e
topology: v6e:2x2x1
jax: 0.10.0
libtpu: 0.0.40
codegen_flags: <defaults>
</compile_context>

<pallas_src>
import jax
import jax.numpy as jnp
from jax.experimental import pallas as pl
from jax.experimental.pallas import tpu as pltpu

# ----------------------------- config ---------------------------------------
IN_SHAPE = (1, 16, 16)    # (C, H, W)
OUT_SHAPE = (2,)
CHANNELS = (4, 8)
STRIDES = (2, 2)
KERNEL = 3
PADDING = 1               # same_padding(kernel_size=3, dilation=1)
PRELU_INIT = 0.25         # torch.nn.PReLU default
EPS = 1e-5                # nn.InstanceNorm2d default eps
K2 = KERNEL * KERNEL


# ----------------------------- one-time packing -------------------------------
def _make_tap_matrices(h, w, stride, k=KERNEL, pad=PADDING):
    """(k*k, h*w, ho*wo) 0/1 matrices: column (ho, wo) of tap (dh, dw) selects
    input pixel (stride*ho + dh - pad, stride*wo + dw - pad); out-of-range
    sources select nothing (implicit zero padding)."""
    ho = (h + 2 * pad - k) // stride + 1
    wo = (w + 2 * pad - k) // stride + 1
    h_in = jnp.arange(h * w) // w
    w_in = jnp.arange(h * w) % w
    h_out = jnp.arange(ho * wo) // wo
    w_out = jnp.arange(ho * wo) % wo
    taps = []
    for dh in range(k):
        for dw in range(k):
            src_h = stride * h_out + dh - pad
            src_w = stride * w_out + dw - pad
            m = (h_in[:, None] == src_h[None, :]) & (w_in[:, None] == src_w[None, :])
            taps.append(m.astype(jnp.float32))
    return jnp.stack(taps)


def _fold_conv(weights, h, w, stride):
    """Fold taps + channel mix into one matrix.

    weights: (Cout, Cin, k, k) ->  M: (Cin*HWin, Cout*HWout) with
    M[ci*HWin + p_in, co*HWout + p_out] = sum_t W[co, ci, t] * T_t[p_in, p_out].
    Exact: for a given (p_in, p_out) at most one tap contributes.
    """
    t = _make_tap_matrices(h, w, stride)                      # (9, HWin, HWout)
    cout, cin = weights.shape[0], weights.shape[1]
    w9 = weights.reshape(cout, cin, K2).astype(jnp.float32)   # (Cout, Cin, 9)
    m = jnp.einsum("oit,tpq->ipoq", w9, t,
                   precision=jax.lax.Precision.HIGHEST)       # pack-time only
    return m.reshape(cin * t.shape[1], cout * t.shape[2])


def pack_params(params, compute_dtype=jnp.bfloat16):
    """One-time, batch-independent weight/layout packing for the fused kernel."""
    packed = {"layers": [], "compute_dtype": compute_dtype}
    h, w = IN_SHAPE[1], IN_SHAPE[2]
    for layer in params["layers"]:
        s = layer["stride"]
        ho = (h + 2 * PADDING - KERNEL) // s + 1
        wo = (w + 2 * PADDING - KERNEL) // s + 1
        hwout = ho * wo
        c = layer["u0_w"].shape[0]
        # unit0 conv and residual conv fused along Cout (same input, same stride)
        w_comb = jnp.concatenate([layer["u0_w"], layer["res_w"]], axis=0)
        b_comb = jnp.concatenate([layer["u0_b"], layer["res_b"]], axis=0)
        mavg = jnp.kron(jnp.eye(c, dtype=jnp.float32),
                        jnp.full((hwout, hwout), 1.0 / hwout, jnp.float32))
        packed["layers"].append(dict(
            mc=_fold_conv(w_comb, h, w, s).astype(compute_dtype),
            bc=jnp.repeat(b_comb, hwout)[None, :].astype(jnp.float32),
            mu1=_fold_conv(layer["u1_w"], ho, wo, 1).astype(compute_dtype),
            bu1=jnp.repeat(layer["u1_b"], hwout)[None, :].astype(jnp.float32),
            mavg=mavg.astype(compute_dtype),   # 1/HW is a power of two: exact in bf16
            c_hw=c * hwout,
            a0=float(layer["a0"]), a1=float(layer["a1"]),
            last_conv_only=layer["last_conv_only"],
        ))
        h, w = ho, wo
    packed["lin_w"] = params["lin_w"].astype(compute_dtype)   # (C*Hf*Wf, out), rows (c,h,w)
    packed["lin_b"] = params["lin_b"][None, :].astype(jnp.float32)
    return packed


# ----------------------------- fused forward ---------------------------------
def regressor_forward(packed, x):
    """x: (N, Cin, H, W) NCHW, matching the PyTorch module boundary."""
    n, cin, h, w = x.shape
    l0, l1 = packed["layers"]
    dt = packed["compute_dtype"]
    out_feat = packed["lin_w"].shape[1]

    # (N, C*HW): batch on sublanes, channel-major spatial on lanes (lane-dense).
    a_in = x.astype(jnp.float32).reshape(n, cin * h * w)

    def _dot(a, b_ref):
        # bf16 (or f32) MXU operands, f32 accumulation.
        return jnp.dot(a.astype(dt), b_ref[...], preferred_element_type=jnp.float32)

    def _in_prelu(a, mavg_ref, alpha):
        # Per-(n, c) InstanceNorm2d (biased var) on the (N, C*HW) layout via a
        # block-averaging matmul; elementwise math stays f32.
        mean_b = _dot(a, mavg_ref)                       # broadcasted per-(n,c) mean
        centered = a - mean_b
        var_b = _dot(jnp.square(centered), mavg_ref)     # broadcasted per-(n,c) var
        xn = centered * jax.lax.rsqrt(var_b + EPS)
        return jnp.where(xn >= 0, xn, alpha * xn)

    def _residual_unit(a, mc_ref, bc_ref, mu1_ref, bu1_ref, mavg_ref,
                       alpha0, alpha1, last_conv_only, c_hw):
        # Fused (unit0 conv | residual conv): one matmul, split by lane slice.
        y = _dot(a, mc_ref) + bc_ref[...]                # (N, 2*C*HWout)
        hcur, res = y[:, :c_hw], y[:, c_hw:]
        hcur = _in_prelu(hcur, mavg_ref, alpha0)         # unit0: conv -> IN -> PReLU
        hcur = _dot(hcur, mu1_ref) + bu1_ref[...]        # unit1: conv, stride 1
        if not last_conv_only:
            hcur = _in_prelu(hcur, mavg_ref, alpha1)
        return hcur + res

    def kernel(x_ref,
               mc0_ref, bc0_ref, mu10_ref, bu10_ref, mavg0_ref,
               mc1_ref, bc1_ref, mu11_ref, bu11_ref, mavg1_ref,
               lw_ref, lb_ref, o_ref):
        a = _residual_unit(x_ref[...], mc0_ref, bc0_ref, mu10_ref, bu10_ref,
                           mavg0_ref, l0["a0"], l0["a1"],
                           l0["last_conv_only"], l0["c_hw"])
        a = _residual_unit(a, mc1_ref, bc1_ref, mu11_ref, bu11_ref,
                           mavg1_ref, l1["a0"], l1["a1"],
                           l1["last_conv_only"], l1["c_hw"])
        # Flatten + Linear: final activation layout (N, C*Hf*Wf) already matches
        # torch's NCHW flatten -> one (N,128)@(128,2) matmul.
        o_ref[...] = _dot(a, lw_ref) + lb_ref[...]

    operands = (a_in,
                l0["mc"], l0["bc"], l0["mu1"], l0["bu1"], l0["mavg"],
                l1["mc"], l1["bc"], l1["mu1"], l1["bu1"], l1["mavg"],
                packed["lin_w"], packed["lin_b"])
    vmem = pl.BlockSpec(memory_space=pltpu.MemorySpace.VMEM)
    y = pl.pallas_call(
        kernel,
        out_shape=jax.ShapeDtypeStruct((n, out_feat), jnp.float32),
        in_specs=[vmem] * len(operands),
        out_specs=vmem,
    )(*operands)
    return y.reshape((n,) + OUT_SHAPE)


# ----------------------------- deterministic init -----------------------------
def _conv_init(key, cout, cin, k):
    kw_key, kb_key = jax.random.split(key)
    fan_in = cin * k * k
    bound = 1.0 / (fan_in ** 0.5)
    w = jax.random.uniform(kw_key, (cout, cin, k, k), jnp.float32, -bound, bound)
    b = jax.random.uniform(kb_key, (cout,), jnp.float32, -bound, bound)
    return w, b


def init_params(key):
    params = {"layers": []}
    echannel = IN_SHAPE[0]
    spatial = list(IN_SHAPE[1:])
    n_layers = len(CHANNELS)
    for i, (c, s) in enumerate(zip(CHANNELS, STRIDES)):
        key, k0, k1, kr = jax.random.split(key, 4)
        u0_w, u0_b = _conv_init(k0, c, echannel, KERNEL)
        u1_w, u1_b = _conv_init(k1, c, c, KERNEL)
        res_w, res_b = _conv_init(kr, c, echannel, KERNEL)
        params["layers"].append(dict(
            u0_w=u0_w, u0_b=u0_b, a0=PRELU_INIT,
            u1_w=u1_w, u1_b=u1_b, a1=PRELU_INIT,
            res_w=res_w, res_b=res_b,
            stride=s, last_conv_only=(i == n_layers - 1),
        ))
        echannel = c
        spatial = [(d + 2 * PADDING - KERNEL) // s + 1 for d in spatial]

    in_feat = echannel * spatial[0] * spatial[1]
    out_feat = 1
    for d in OUT_SHAPE:
        out_feat *= d
    key, klw, klb = jax.random.split(key, 3)
    bound = 1.0 / (in_feat ** 0.5)
    params["lin_w"] = jax.random.uniform(klw, (in_feat, out_feat), jnp.float32,
                                         -bound, bound)
    params["lin_b"] = jax.random.uniform(klb, (out_feat,), jnp.float32,
                                         -bound, bound)
    return params


# ----------------------------- pure-XLA reference ------------------------------
def _conv_ref(x, w, b, stride, precision):
    y = jax.lax.conv_general_dilated(
        x, w, window_strides=(stride, stride),
        padding=((PADDING, PADDING), (PADDING, PADDING)),
        dimension_numbers=("NCHW", "OIHW", "NCHW"), precision=precision)
    return y + b[None, :, None, None]


def _in_prelu_ref(x, a):
    mean = x.mean(axis=(2, 3), keepdims=True)
    var = ((x - mean) ** 2).mean(axis=(2, 3), keepdims=True)
    xn = (x - mean) * jax.lax.rsqrt(var + EPS)
    return jnp.where(xn >= 0, xn, a * xn)


def regressor_reference(params, x, precision=None):
    for layer in params["layers"]:
        res = _conv_ref(x, layer["res_w"], layer["res_b"], layer["stride"], precision)
        h = _conv_ref(x, layer["u0_w"], layer["u0_b"], layer["stride"], precision)
        h = _in_prelu_ref(h, layer["a0"])
        h = _conv_ref(h, layer["u1_w"], layer["u1_b"], 1, precision)
        if not layer["last_conv_only"]:
            h = _in_prelu_ref(h, layer["a1"])
        x = h + res
    n = x.shape[0]
    y = jnp.dot(x.reshape(n, -1), params["lin_w"], precision=precision) + params["lin_b"]
    return y.reshape((n,) + OUT_SHAPE)


# ----------------------------- main -------------------------------------------
if __name__ == "__main__":
    key = jax.random.PRNGKey(0)
    kp, kx = jax.random.split(key)
    params = init_params(kp)

    batch = 2
    x = jax.random.normal(kx, (batch,) + IN_SHAPE, dtype=jnp.float32)  # NCHW

    # Ground truth at HIGHEST precision (pure XLA).
    y_ref = regressor_reference(params, x, precision=jax.lax.Precision.HIGHEST)

    # --- validation path: f32 constants, tight tolerance (catches layout bugs) ---
    packed_f32 = pack_params(params, compute_dtype=jnp.float32)
    y_exact = jax.block_until_ready(regressor_forward(packed_f32, x))
    assert y_exact.shape == (batch,) + OUT_SHAPE, y_exact.shape
    assert bool(jnp.all(jnp.isfinite(y_exact)))
    assert bool(jnp.allclose(y_exact, y_ref, rtol=2e-3, atol=2e-3)), (y_exact, y_ref)

    # --- fast path: bf16 MXU operands, f32 accumulation / elementwise ---
    packed = pack_params(params, compute_dtype=jnp.bfloat16)
    y = jax.block_until_ready(regressor_forward(packed, x))
    assert y.shape == (batch,) + OUT_SHAPE, y.shape
    assert bool(jnp.all(jnp.isfinite(y)))
    assert bool(jnp.allclose(y, y_ref, rtol=1e-1, atol=1e-1)), (y, y_ref)

    print("KERNEL_OK")
</pallas_src>

<mosaic_0001>
module attributes {stable_mosaic.version = 11 : i64} {
  func.func @kernel(%arg0: memref<2x256xf32, #tpu.memory_space<vmem>>, %arg1: memref<256x512xf32, #tpu.memory_space<vmem>>, %arg2: memref<1x512xf32, #tpu.memory_space<vmem>>, %arg3: memref<256x256xf32, #tpu.memory_space<vmem>>, %arg4: memref<1x256xf32, #tpu.memory_space<vmem>>, %arg5: memref<256x256xf32, #tpu.memory_space<vmem>>, %arg6: memref<256x256xf32, #tpu.memory_space<vmem>>, %arg7: memref<1x256xf32, #tpu.memory_space<vmem>>, %arg8: memref<128x128xf32, #tpu.memory_space<vmem>>, %arg9: memref<1x128xf32, #tpu.memory_space<vmem>>, %arg10: memref<128x128xf32, #tpu.memory_space<vmem>>, %arg11: memref<128x2xf32, #tpu.memory_space<vmem>>, %arg12: memref<1x2xf32, #tpu.memory_space<vmem>>, %arg13: memref<2x2xf32, #tpu.memory_space<vmem>>) attributes {dimension_semantics = [], scalar_prefetch = 0 : i64, scratch_operands = 0 : i64, tpu.core_type = #tpu.core_type<tc>} {
    %c0 = arith.constant 0 : index
    %c0_0 = arith.constant 0 : index
    %0 = vector.load %arg0[%c0, %c0_0] : memref<2x256xf32, #tpu.memory_space<vmem>>, vector<2x256xf32>
    %c0_1 = arith.constant 0 : index
    %c0_2 = arith.constant 0 : index
    %1 = vector.load %arg1[%c0_1, %c0_2] : memref<256x512xf32, #tpu.memory_space<vmem>>, vector<256x512xf32>
    %cst = arith.constant dense<0.000000e+00> : vector<2x512xf32>
    %2 = tpu.matmul %0, %1, %cst {dimension_numbers = #tpu.dot_dimension_numbers<[1], [0], [0], [1], [0, 0, 1, 1], [], []>} : vector<2x256xf32>, vector<256x512xf32>, vector<2x512xf32> -> vector<2x512xf32>
    %c0_3 = arith.constant 0 : index
    %c0_4 = arith.constant 0 : index
    %3 = vector.load %arg2[%c0_3, %c0_4] : memref<1x512xf32, #tpu.memory_space<vmem>>, vector<1x512xf32>
    %4 = vector.broadcast %3 : vector<1x512xf32> to vector<2x512xf32>
    %5 = arith.addf %2, %4 : vector<2x512xf32>
    %6 = vector.extract_strided_slice %5 {offsets = [0, 0], sizes = [2, 256], strides = [1, 1]} : vector<2x512xf32> to vector<2x256xf32>
    %7 = vector.extract_strided_slice %5 {offsets = [0, 256], sizes = [2, 256], strides = [1, 1]} : vector<2x512xf32> to vector<2x256xf32>
    %c0_5 = arith.constant 0 : index
    %c0_6 = arith.constant 0 : index
    %8 = vector.load %arg5[%c0_5, %c0_6] : memref<256x256xf32, #tpu.memory_space<vmem>>, vector<256x256xf32>
    %cst_7 = arith.constant dense<0.000000e+00> : vector<2x256xf32>
    %9 = tpu.matmul %6, %8, %cst_7 {dimension_numbers = #tpu.dot_dimension_numbers<[1], [0], [0], [1], [0, 0, 1, 1], [], []>} : vector<2x256xf32>, vector<256x256xf32>, vector<2x256xf32> -> vector<2x256xf32>
    %10 = arith.subf %6, %9 : vector<2x256xf32>
    %11 = arith.mulf %10, %10 : vector<2x256xf32>
    %c0_8 = arith.constant 0 : index
    %c0_9 = arith.constant 0 : index
    %12 = vector.load %arg5[%c0_8, %c0_9] : memref<256x256xf32, #tpu.memory_space<vmem>>, vector<256x256xf32>
    %cst_10 = arith.constant dense<0.000000e+00> : vector<2x256xf32>
    %13 = tpu.matmul %11, %12, %cst_10 {dimension_numbers = #tpu.dot_dimension_numbers<[1], [0], [0], [1], [0, 0, 1, 1], [], []>} : vector<2x256xf32>, vector<256x256xf32>, vector<2x256xf32> -> vector<2x256xf32>
    %cst_11 = arith.constant 9.99999974E-6 : f32
    %14 = vector.broadcast %cst_11 : f32 to vector<2x256xf32>
    %15 = arith.addf %13, %14 : vector<2x256xf32>
    %16 = math.rsqrt %15 : vector<2x256xf32>
    %17 = arith.mulf %10, %16 : vector<2x256xf32>
    %cst_12 = arith.constant 0.000000e+00 : f32
    %18 = vector.broadcast %cst_12 : f32 to vector<2x256xf32>
    %19 = arith.cmpf oge, %17, %18 : vector<2x256xf32>
    %cst_13 = arith.constant 2.500000e-01 : f32
    %20 = vector.broadcast %cst_13 : f32 to vector<2x256xf32>
    %21 = arith.mulf %20, %17 : vector<2x256xf32>
    %22 = arith.select %19, %17, %21 : vector<2x256xi1>, vector<2x256xf32>
    %c0_14 = arith.constant 0 : index
    %c0_15 = arith.constant 0 : index
    %23 = vector.load %arg3[%c0_14, %c0_15] : memref<256x256xf32, #tpu.memory_space<vmem>>, vector<256x256xf32>
    %cst_16 = arith.constant dense<0.000000e+00> : vector<2x256xf32>
    %24 = tpu.matmul %22, %23, %cst_16 {dimension_numbers = #tpu.dot_dimension_numbers<[1], [0], [0], [1], [0, 0, 1, 1], [], []>} : vector<2x256xf32>, vector<256x256xf32>, vector<2x256xf32> -> vector<2x256xf32>
    %c0_17 = arith.constant 0 : index
    %c0_18 = arith.constant 0 : index
    %25 = vector.load %arg4[%c0_17, %c0_18] : memref<1x256xf32, #tpu.memory_space<vmem>>, vector<1x256xf32>
    %26 = vector.broadcast %25 : vector<1x256xf32> to vector<2x256xf32>
    %27 = arith.addf %24, %26 : vector<2x256xf32>
    %c0_19 = arith.constant 0 : index
    %c0_20 = arith.constant 0 : index
    %28 = vector.load %arg5[%c0_19, %c0_20] : memref<256x256xf32, #tpu.memory_space<vmem>>, vector<256x256xf32>
    %cst_21 = arith.constant dense<0.000000e+00> : vector<2x256xf32>
    %29 = tpu.matmul %27, %28, %cst_21 {dimension_numbers = #tpu.dot_dimension_numbers<[1], [0], [0], [1], [0, 0, 1, 1], [], []>} : vector<2x256xf32>, vector<256x256xf32>, vector<2x256xf32> -> vector<2x256xf32>
    %30 = arith.subf %27, %29 : vector<2x256xf32>
    %31 = arith.mulf %30, %30 : vector<2x256xf32>
    %c0_22 = arith.constant 0 : index
    %c0_23 = arith.constant 0 : index
    %32 = vector.load %arg5[%c0_22, %c0_23] : memref<256x256xf32, #tpu.memory_space<vmem>>, vector<256x256xf32>
    %cst_24 = arith.constant dense<0.000000e+00> : vector<2x256xf32>
    %33 = tpu.matmul %31, %32, %cst_24 {dimension_numbers = #tpu.dot_dimension_numbers<[1], [0], [0], [1], [0, 0, 1, 1], [], []>} : vector<2x256xf32>, vector<256x256xf32>, vector<2x256xf32> -> vector<2x256xf32>
    %cst_25 = arith.constant 9.99999974E-6 : f32
    %34 = vector.broadcast %cst_25 : f32 to vector<2x256xf32>
    %35 = arith.addf %33, %34 : vector<2x256xf32>
    %36 = math.rsqrt %35 : vector<2x256xf32>
    %37 = arith.mulf %30, %36 : vector<2x256xf32>
    %cst_26 = arith.constant 0.000000e+00 : f32
    %38 = vector.broadcast %cst_26 : f32 to vector<2x256xf32>
    %39 = arith.cmpf oge, %37, %38 : vector<2x256xf32>
    %cst_27 = arith.constant 2.500000e-01 : f32
    %40 = vector.broadcast %cst_27 : f32 to vector<2x256xf32>
    %41 = arith.mulf %40, %37 : vector<2x256xf32>
    %42 = arith.select %39, %37, %41 : vector<2x256xi1>, vector<2x256xf32>
    %43 = arith.addf %42, %7 : vector<2x256xf32>
    %c0_28 = arith.constant 0 : index
    %c0_29 = arith.constant 0 : index
    %44 = vector.load %arg6[%c0_28, %c0_29] : memref<256x256xf32, #tpu.memory_space<vmem>>, vector<256x256xf32>
    %cst_30 = arith.constant dense<0.000000e+00> : vector<2x256xf32>
    %45 = tpu.matmul %43, %44, %cst_30 {dimension_numbers = #tpu.dot_dimension_numbers<[1], [0], [0], [1], [0, 0, 1, 1], [], []>} : vector<2x256xf32>, vector<256x256xf32>, vector<2x256xf32> -> vector<2x256xf32>
    %c0_31 = arith.constant 0 : index
    %c0_32 = arith.constant 0 : index
    %46 = vector.load %arg7[%c0_31, %c0_32] : memref<1x256xf32, #tpu.memory_space<vmem>>, vector<1x256xf32>
    %47 = vector.broadcast %46 : vector<1x256xf32> to vector<2x256xf32>
    %48 = arith.addf %45, %47 : vector<2x256xf32>
    %49 = vector.extract_strided_slice %48 {offsets = [0, 0], sizes = [2, 128], strides = [1, 1]} : vector<2x256xf32> to vector<2x128xf32>
    %50 = vector.extract_strided_slice %48 {offsets = [0, 128], sizes = [2, 128], strides = [1, 1]} : vector<2x256xf32> to vector<2x128xf32>
    %c0_33 = arith.constant 0 : index
    %c0_34 = arith.constant 0 : index
    %51 = vector.load %arg10[%c0_33, %c0_34] : memref<128x128xf32, #tpu.memory_space<vmem>>, vector<128x128xf32>
    %cst_35 = arith.constant dense<0.000000e+00> : vector<2x128xf32>
    %52 = tpu.matmul %49, %51, %cst_35 {dimension_numbers = #tpu.dot_dimension_numbers<[1], [0], [0], [1], [0, 0, 1, 1], [], []>} : vector<2x128xf32>, vector<128x128xf32>, vector<2x128xf32> -> vector<2x128xf32>
    %53 = arith.subf %49, %52 : vector<2x128xf32>
    %54 = arith.mulf %53, %53 : vector<2x128xf32>
    %c0_36 = arith.constant 0 : index
    %c0_37 = arith.constant 0 : index
    %55 = vector.load %arg10[%c0_36, %c0_37] : memref<128x128xf32, #tpu.memory_space<vmem>>, vector<128x128xf32>
    %cst_38 = arith.constant dense<0.000000e+00> : vector<2x128xf32>
    %56 = tpu.matmul %54, %55, %cst_38 {dimension_numbers = #tpu.dot_dimension_numbers<[1], [0], [0], [1], [0, 0, 1, 1], [], []>} : vector<2x128xf32>, vector<128x128xf32>, vector<2x128xf32> -> vector<2x128xf32>
    %cst_39 = arith.constant 9.99999974E-6 : f32
    %57 = vector.broadcast %cst_39 : f32 to vector<2x128xf32>
    %58 = arith.addf %56, %57 : vector<2x128xf32>
    %59 = math.rsqrt %58 : vector<2x128xf32>
    %60 = arith.mulf %53, %59 : vector<2x128xf32>
    %cst_40 = arith.constant 0.000000e+00 : f32
    %61 = vector.broadcast %cst_40 : f32 to vector<2x128xf32>
    %62 = arith.cmpf oge, %60, %61 : vector<2x128xf32>
    %cst_41 = arith.constant 2.500000e-01 : f32
    %63 = vector.broadcast %cst_41 : f32 to vector<2x128xf32>
    %64 = arith.mulf %63, %60 : vector<2x128xf32>
    %65 = arith.select %62, %60, %64 : vector<2x128xi1>, vector<2x128xf32>
    %c0_42 = arith.constant 0 : index
    %c0_43 = arith.constant 0 : index
    %66 = vector.load %arg8[%c0_42, %c0_43] : memref<128x128xf32, #tpu.memory_space<vmem>>, vector<128x128xf32>
    %cst_44 = arith.constant dense<0.000000e+00> : vector<2x128xf32>
    %67 = tpu.matmul %65, %66, %cst_44 {dimension_numbers = #tpu.dot_dimension_numbers<[1], [0], [0], [1], [0, 0, 1, 1], [], []>} : vector<2x128xf32>, vector<128x128xf32>, vector<2x128xf32> -> vector<2x128xf32>
    %c0_45 = arith.constant 0 : index
    %c0_46 = arith.constant 0 : index
    %68 = vector.load %arg9[%c0_45, %c0_46] : memref<1x128xf32, #tpu.memory_space<vmem>>, vector<1x128xf32>
    %69 = vector.broadcast %68 : vector<1x128xf32> to vector<2x128xf32>
    %70 = arith.addf %67, %69 : vector<2x128xf32>
    %71 = arith.addf %70, %50 : vector<2x128xf32>
    %c0_47 = arith.constant 0 : index
    %c0_48 = arith.constant 0 : index
    %72 = vector.load %arg11[%c0_47, %c0_48] : memref<128x2xf32, #tpu.memory_space<vmem>>, vector<128x2xf32>
    %cst_49 = arith.constant dense<0.000000e+00> : vector<2x2xf32>
    %73 = tpu.matmul %71, %72, %cst_49 {dimension_numbers = #tpu.dot_dimension_numbers<[1], [0], [0], [1], [0, 0, 1, 1], [], []>} : vector<2x128xf32>, vector<128x2xf32>, vector<2x2xf32> -> vector<2x2xf32>
    %c0_50 = arith.constant 0 : index
    %c0_51 = arith.constant 0 : index
    %74 = vector.load %arg12[%c0_50, %c0_51] : memref<1x2xf32, #tpu.memory_space<vmem>>, vector<1x2xf32>
    %75 = vector.broadcast %74 : vector<1x2xf32> to vector<2x2xf32>
    %76 = arith.addf %73, %75 : vector<2x2xf32>
    %c0_52 = arith.constant 0 : index
    %c0_53 = arith.constant 0 : index
    %77 = vector.load %arg13[%c0_52, %c0_53] : memref<2x2xf32, #tpu.memory_space<vmem>>, vector<2x2xf32>
    tpu.vector_store %arg13[%c0_52, %c0_53], %76 {strides = array<i32>} : memref<2x2xf32, #tpu.memory_space<vmem>>, vector<2x2xf32>,
    return
  }
}

</mosaic_0001>

<llo_original>
// kernel: tpu_custom_call.1
$region0: #{tpu_custom_call.1}
  #allocation0 [shape = 'u32[]', space=smem, size = 0x4, offset = 0x4, fixed_abs, tag = 'smem constant byte address 0x4 - core index']
  #allocation1 [shape = 'u32[144,128]{1,0:T(1,128)}', space=vmem, size = 0x12000, scoped, tag = 'internal scratch']
  %s0 = inlined_call_operand.vmem [shape: f32[2,256], index: 0, kind: input, shape index: {}]
  %s1 = inlined_call_operand.hbm [shape: f32[256,512], index: 1, kind: input, shape index: {}]
  %s2 = inlined_call_operand.vmem [shape: f32[1,512], index: 2, kind: input, shape index: {}]
  %s3 = inlined_call_operand.hbm [shape: f32[256,256], index: 3, kind: input, shape index: {}]
  %s4 = inlined_call_operand.vmem [shape: f32[1,256], index: 4, kind: input, shape index: {}]
  %s5 = inlined_call_operand.hbm [shape: f32[256,256], index: 5, kind: input, shape index: {}]
  %s6 = inlined_call_operand.hbm [shape: f32[256,256], index: 6, kind: input, shape index: {}]
  %s7 = inlined_call_operand.vmem [shape: f32[1,256], index: 7, kind: input, shape index: {}]
  %s8 = inlined_call_operand.vmem [shape: f32[128,128], index: 8, kind: input, shape index: {}]
  %s9 = inlined_call_operand.vmem [shape: f32[1,128], index: 9, kind: input, shape index: {}]
  %s10 = inlined_call_operand.hbm [shape: f32[128,128], index: 10, kind: input, shape index: {}]
  %s11 = inlined_call_operand.vmem [shape: f32[128,2], index: 11, kind: input, shape index: {}]
  %s12 = inlined_call_operand.vmem [shape: f32[1,2], index: 12, kind: input, shape index: {}]
  %s13 = inlined_call_operand.hbm [shape: f32[2,2], index: 13, kind: output, shape index: {}]
  %s14 = sld [smem:[#allocation0]]
  $region82: #{tpu_custom_call.1} parent=0
    _
  %s16 = ssub.s32 1, %s14
  %s17 = scalar_select 0, %s16, %s14
  $region1: #{tpu_custom_call.1} parent=0
    #allocation2 [shape = 'u8[524288]{0}', space=vmem, size = 0x80000, scoped, tag = 'input window, operand 1, single buffered']
    #allocation3 [shape = 's32[1]{0}', space=sflag, size = 0x4, scoped, tag = 'scoped memory for tpu_custom_call.1']
    #allocation4 [shape = 's32[1]{0}', space=sflag, size = 0x4, scoped, tag = 'scoped memory for tpu_custom_call.1']
    #allocation5 [shape = 'u8[262144]{0}', space=vmem, size = 0x40000, scoped, tag = 'input window, operand 3, single buffered']
    #allocation6 [shape = 's32[1]{0}', space=sflag, size = 0x4, scoped, tag = 'scoped memory for tpu_custom_call.1']
    #allocation7 [shape = 'u8[262144]{0}', space=vmem, size = 0x40000, scoped, tag = 'input window, operand 5, single buffered']
    #allocation8 [shape = 'u8[262144]{0}', space=vmem, size = 0x40000, scoped, tag = 'input window, operand 6, single buffered']
    #allocation9 [shape = 's32[1]{0}', space=sflag, size = 0x4, scoped, tag = 'scoped memory for tpu_custom_call.1']
    #allocation10 [shape = 'u8[65536]{0}', space=vmem, size = 0x10000, scoped, tag = 'input window, operand 10, single buffered']
    #allocation11 [shape = 'u8[1024]{0}', space=vmem, size = 0x400, scoped, tag = 'output window, operand 0, single buffered']
    %18 = vsyncpa [#allocation3], 0
    %19 = vsyncpa [#allocation6], 0
    %20 = vsyncpa [#allocation9], 0
    %21 = vsyncpa [#allocation4], 0
    // Predicated region
    $region2: #{tpu_custom_call.1} parent=1 // pred_check
      _
    $region3: #{tpu_custom_call.1} parent=1 // pred_check_branch
      %23 = sbr.rel (0) target = $region5
    $region4: #{tpu_custom_call.1} parent=1 // pred_region
      _
    $region5: #{tpu_custom_call.1} parent=1 // pred_fallthru
      _
    // Predicated region
    $region6: #{tpu_custom_call.1} parent=1 // pred_check
      _
    $region7: #{tpu_custom_call.1} parent=1 // pred_check_branch
      %25 = sbr.rel (0) target = $region9
    $region8: #{tpu_custom_call.1} parent=1 // pred_region
      %s27 = ssub.s32 16384, 16384
      %28 = vsyncadd [#allocation3], %s27
      %s29 = sshll.u32 [#allocation2], 4
      %s30 = int_to_ptr.vmem [resolvable:$true] %s29
      %35 = dma.hbm_to_vmem [thread:$0]  %s1, 16384, %s30, [#allocation3], 512, 512, 32
    $region9: #{tpu_custom_call.1} parent=1 // pred_fallthru
      _
    // Predicated region
    $region10: #{tpu_custom_call.1} parent=1 // pred_check
      _
    $region11: #{tpu_custom_call.1} parent=1 // pred_check_branch
      %37 = sbr.rel (0) target = $region13
    $region12: #{tpu_custom_call.1} parent=1 // pred_region
      _
    $region13: #{tpu_custom_call.1} parent=1 // pred_fallthru
      _
    // Predicated region
    $region14: #{tpu_custom_call.1} parent=1 // pred_check
      _
    $region15: #{tpu_custom_call.1} parent=1 // pred_check_branch
      %39 = sbr.rel (0) target = $region17
    $region16: #{tpu_custom_call.1} parent=1 // pred_region
      %s41 = ssub.s32 8192, 8192
      %42 = vsyncadd [#allocation6], %s41
      %s43 = sshll.u32 [#allocation5], 4
      %s44 = int_to_ptr.vmem [resolvable:$true] %s43
      %49 = dma.hbm_to_vmem [thread:$0]  %s3, 8192, %s44, [#allocation6], 256, 256, 16
    $region17: #{tpu_custom_call.1} parent=1 // pred_fallthru
      _
    // Predicated region
    $region18: #{tpu_custom_call.1} parent=1 // pred_check
      _
    $region19: #{tpu_custom_call.1} parent=1 // pred_check_branch
      %51 = sbr.rel (0) target = $region21
    $region20: #{tpu_custom_call.1} parent=1 // pred_region
      _
    $region21: #{tpu_custom_call.1} parent=1 // pred_fallthru
      _
    // Predicated region
    $region22: #{tpu_custom_call.1} parent=1 // pred_check
      _
    $region23: #{tpu_custom_call.1} parent=1 // pred_check_branch
      %53 = sbr.rel (0) target = $region25
    $region24: #{tpu_custom_call.1} parent=1 // pred_region
      %s55 = ssub.s32 8192, 8192
      %56 = vsyncadd [#allocation6], %s55
      %s57 = sshll.u32 [#allocation7], 4
      %s58 = int_to_ptr.vmem [resolvable:$true] %s57
      %63 = dma.hbm_to_vmem [thread:$0]  %s5, 8192, %s58, [#allocation6], 256, 256, 16
    $region25: #{tpu_custom_call.1} parent=1 // pred_fallthru
      _
    // Predicated region
    $region26: #{tpu_custom_call.1} parent=1 // pred_check
      _
    $region27: #{tpu_custom_call.1} parent=1 // pred_check_branch
      %65 = sbr.rel (0) target = $region29
    $region28: #{tpu_custom_call.1} parent=1 // pred_region
      %s67 = ssub.s32 8192, 8192
      %68 = vsyncadd [#allocation9], %s67
      %s69 = sshll.u32 [#allocation8], 4
      %s70 = int_to_ptr.vmem [resolvable:$true] %s69
      %75 = dma.hbm_to_vmem [thread:$0]  %s6, 8192, %s70, [#allocation9], 256, 256, 16
    $region29: #{tpu_custom_call.1} parent=1 // pred_fallthru
      _
    // Predicated region
    $region30: #{tpu_custom_call.1} parent=1 // pred_check
      _
    $region31: #{tpu_custom_call.1} parent=1 // pred_check_branch
      %77 = sbr.rel (0) target = $region33
    $region32: #{tpu_custom_call.1} parent=1 // pred_region
      _
    $region33: #{tpu_custom_call.1} parent=1 // pred_fallthru
      _
    // Predicated region
    $region34: #{tpu_custom_call.1} parent=1 // pred_check
      _
    $region35: #{tpu_custom_call.1} parent=1 // pred_check_branch
      %79 = sbr.rel (0) target = $region37
    $region36: #{tpu_custom_call.1} parent=1 // pred_region
      _
    $region37: #{tpu_custom_call.1} parent=1 // pred_fallthru
      _
    // Predicated region
    $region38: #{tpu_custom_call.1} parent=1 // pred_check
      _
    $region39: #{tpu_custom_call.1} parent=1 // pred_check_branch
      %81 = sbr.rel (0) target = $region41
    $region40: #{tpu_custom_call.1} parent=1 // pred_region
      _
    $region41: #{tpu_custom_call.1} parent=1 // pred_fallthru
      _
    // Predicated region
    $region42: #{tpu_custom_call.1} parent=1 // pred_check
      _
    $region43: #{tpu_custom_call.1} parent=1 // pred_check_branch
      %83 = sbr.rel (0) target = $region45
    $region44: #{tpu_custom_call.1} parent=1 // pred_region
      %s85 = ssub.s32 2048, 2048
      %86 = vsyncadd [#allocation9], %s85
      %s87 = sshll.u32 [#allocation10], 4
      %s88 = int_to_ptr.vmem [resolvable:$true] %s87
      %93 = dma.hbm_to_vmem [thread:$0]  %s10, 2048, %s88, [#allocation9], 128, 128, 8
    $region45: #{tpu_custom_call.1} parent=1 // pred_fallthru
      _
    // Predicated region
    $region46: #{tpu_custom_call.1} parent=1 // pred_check
      _
    $region47: #{tpu_custom_call.1} parent=1 // pred_check_branch
      %95 = sbr.rel (0) target = $region49
    $region48: #{tpu_custom_call.1} parent=1 // pred_region
      _
    $region49: #{tpu_custom_call.1} parent=1 // pred_fallthru
      _
    // Predicated region
    $region50: #{tpu_custom_call.1} parent=1 // pred_check
      _
    $region51: #{tpu_custom_call.1} parent=1 // pred_check_branch
      %97 = sbr.rel (0) target = $region53
    $region52: #{tpu_custom_call.1} parent=1 // pred_region
      _
    $region53: #{tpu_custom_call.1} parent=1 // pred_fallthru
      _
    // Predicated region
    $region54: #{tpu_custom_call.1} parent=1 // pred_check
      _
    $region55: #{tpu_custom_call.1} parent=1 // pred_check_branch
      %99 = sbr.rel (0) target = $region57
    $region56: #{tpu_custom_call.1} parent=1 // pred_region
      %100 = dma.done [#allocation3], 16384
    $region57: #{tpu_custom_call.1} parent=1 // pred_fallthru
      _
    // Predicated region
    $region58: #{tpu_custom_call.1} parent=1 // pred_check
      _
    $region59: #{tpu_custom_call.1} parent=1 // pred_check_branch
      %102 = sbr.rel (0) target = $region61
    $region60: #{tpu_custom_call.1} parent=1 // pred_region
      %103 = dma.done [#allocation6], 8192
    $region61: #{tpu_custom_call.1} parent=1 // pred_fallthru
      _
    // Predicated region
    $region62: #{tpu_custom_call.1} parent=1 // pred_check
      _
    $region63: #{tpu_custom_call.1} parent=1 // pred_check_branch
      %105 = sbr.rel (0) target = $region65
    $region64: #{tpu_custom_call.1} parent=1 // pred_region
      %106 = dma.done [#allocation6], 8192
    $region65: #{tpu_custom_call.1} parent=1 // pred_fallthru
      _
    // Predicated region
    $region66: #{tpu_custom_call.1} parent=1 // pred_check
      _
    $region67: #{tpu_custom_call.1} parent=1 // pred_check_branch
      %108 = sbr.rel (0) target = $region69
    $region68: #{tpu_custom_call.1} parent=1 // pred_region
      %109 = dma.done [#allocation9], 8192
    $region69: #{tpu_custom_call.1} parent=1 // pred_fallthru
      _
    // Predicated region
    $region70: #{tpu_custom_call.1} parent=1 // pred_check
      _
    $region71: #{tpu_custom_call.1} parent=1 // pred_check_branch
      %111 = sbr.rel (0) target = $region73
    $region72: #{tpu_custom_call.1} parent=1 // pred_region
      %112 = dma.done [#allocation9], 2048
    $region73: #{tpu_custom_call.1} parent=1 // pred_fallthru
      _
    %v113 = vld [vmem:[%s0] sm:$0xf]
    %v114 = vld [vmem:[#allocation2] sm:$0xff]
    %v115 = vld [vmem:[#allocation2 + $0x8] sm:$0xff]
    %v116 = vld [vmem:[#allocation2 + $0x10] sm:$0xff]
    %v117 = vld [vmem:[#allocation2 + $0x18] sm:$0xff]
    %v118 = vld [vmem:[#allocation2 + $0x20] sm:$0xff]
    %v119 = vld [vmem:[#allocation2 + $0x28] sm:$0xff]
    %v120 = vld [vmem:[#allocation2 + $0x30] sm:$0xff]
    %v121 = vld [vmem:[#allocation2 + $0x38] sm:$0xff]
    %v122 = vld [vmem:[#allocation2 + $0x40] sm:$0xff]
    %v123 = vld [vmem:[#allocation2 + $0x48] sm:$0xff]
    %v124 = vld [vmem:[#allocation2 + $0x50] sm:$0xff]
    %v125 = vld [vmem:[#allocation2 + $0x58] sm:$0xff]
    %v126 = vld [vmem:[#allocation2 + $0x60] sm:$0xff]
    %v127 = vld [vmem:[#allocation2 + $0x68] sm:$0xff]
    %v128 = vld [vmem:[#allocation2 + $0x70] sm:$0xff]
    %v129 = vld [vmem:[#allocation2 + $0x78] sm:$0xff]
    %v130 = vld [vmem:[#allocation2 + $0x80] sm:$0xff]
    %v131 = vld [vmem:[#allocation2 + $0x88] sm:$0xff]
    %v132 = vld [vmem:[#allocation2 + $0x90] sm:$0xff]
    %v133 = vld [vmem:[#allocation2 + $0x98] sm:$0xff]
    %v134 = vld [vmem:[#allocation2 + $0xa0] sm:$0xff]
    %v135 = vld [vmem:[#allocation2 + $0xa8] sm:$0xff]
    %v136 = vld [vmem:[#allocation2 + $0xb0] sm:$0xff]
    %v137 = vld [vmem:[#allocation2 + $0xb8] sm:$0xff]
    %v138 = vld [vmem:[#allocation2 + $0xc0] sm:$0xff]
    %v139 = vld [vmem:[#allocation2 + $0xc8] sm:$0xff]
    %v140 = vld [vmem:[#allocation2 + $0xd0] sm:$0xff]
    %v141 = vld [vmem:[#allocation2 + $0xd8] sm:$0xff]
    %v142 = vld [vmem:[#allocation2 + $0xe0] sm:$0xff]
    %v143 = vld [vmem:[#allocation2 + $0xe8] sm:$0xff]
    %v144 = vld [vmem:[#allocation2 + $0xf0] sm:$0xff]
    %v145 = vld [vmem:[#allocation2 + $0xf8] sm:$0xff]
    %v146 = vld [vmem:[#allocation2 + $0x100] sm:$0xff]
    %v147 = vld [vmem:[#allocation2 + $0x108] sm:$0xff]
    %v148 = vld [vmem:[#allocation2 + $0x110] sm:$0xff]
    %v149 = vld [vmem:[#allocation2 + $0x118] sm:$0xff]
    %v150 = vld [vmem:[#allocation2 + $0x120] sm:$0xff]
    %v151 = vld [vmem:[#allocation2 + $0x128] sm:$0xff]
    %v152 = vld [vmem:[#allocation2 + $0x130] sm:$0xff]
    %v153 = vld [vmem:[#allocation2 + $0x138] sm:$0xff]
    %v154 = vld [vmem:[#allocation2 + $0x140] sm:$0xff]
    %v155 = vld [vmem:[#allocation2 + $0x148] sm:$0xff]
    %v156 = vld [vmem:[#allocation2 + $0x150] sm:$0xff]
    %v157 = vld [vmem:[#allocation2 + $0x158] sm:$0xff]
    %v158 = vld [vmem:[#allocation2 + $0x160] sm:$0xff]
    %v159 = vld [vmem:[#allocation2 + $0x168] sm:$0xff]
    %v160 = vld [vmem:[#allocation2 + $0x170] sm:$0xff]
    %v161 = vld [vmem:[#allocation2 + $0x178] sm:$0xff]
    %v162 = vld [vmem:[#allocation2 + $0x180] sm:$0xff]
    %v163 = vld [vmem:[#allocation2 + $0x188] sm:$0xff]
    %v164 = vld [vmem:[#allocation2 + $0x190] sm:$0xff]
    %v165 = vld [vmem:[#allocation2 + $0x198] sm:$0xff]
    %v166 = vld [vmem:[#allocation2 + $0x1a0] sm:$0xff]
    %v167 = vld [vmem:[#allocation2 + $0x1a8] sm:$0xff]
    %v168 = vld [vmem:[#allocation2 + $0x1b0] sm:$0xff]
    %v169 = vld [vmem:[#allocation2 + $0x1b8] sm:$0xff]
    %v170 = vld [vmem:[#allocation2 + $0x1c0] sm:$0xff]
    %v171 = vld [vmem:[#allocation2 + $0x1c8] sm:$0xff]
    %v172 = vld [vmem:[#allocation2 + $0x1d0] sm:$0xff]
    %v173 = vld [vmem:[#allocation2 + $0x1d8] sm:$0xff]
    %v174 = vld [vmem:[#allocation2 + $0x1e0] sm:$0xff]
    %v175 = vld [vmem:[#allocation2 + $0x1e8] sm:$0xff]
    %v176 = vld [vmem:[#allocation2 + $0x1f0] sm:$0xff]
    %v177 = vld [vmem:[#allocation2 + $0x1f8] sm:$0xff]
    %v178 = vld [vmem:[#allocation2 + $0x200] sm:$0xff]
    %v179 = vld [vmem:[#allocation2 + $0x208] sm:$0xff]
    %v180 = vld [vmem:[#allocation2 + $0x210] sm:$0xff]
    %v181 = vld [vmem:[#allocation2 + $0x218] sm:$0xff]
    %v182 = vld [vmem:[#allocation2 + $0x220] sm:$0xff]
    %v183 = vld [vmem:[#allocation2 + $0x228] sm:$0xff]
    %v184 = vld [vmem:[#allocation2 + $0x230] sm:$0xff]
    %v185 = vld [vmem:[#allocation2 + $0x238] sm:$0xff]
    %v186 = vld [vmem:[#allocation2 + $0x240] sm:$0xff]
    %v187 = vld [vmem:[#allocation2 + $0x248] sm:$0xff]
    %v188 = vld [vmem:[#allocation2 + $0x250] sm:$0xff]
    %v189 = vld [vmem:[#allocation2 + $0x258] sm:$0xff]
    %v190 = vld [vmem:[#allocation2 + $0x260] sm:$0xff]
    %v191 = vld [vmem:[#allocation2 + $0x268] sm:$0xff]
    %v192 = vld [vmem:[#allocation2 + $0x270] sm:$0xff]
    %v193 = vld [vmem:[#allocation2 + $0x278] sm:$0xff]
    %v194 = vld [vmem:[#allocation2 + $0x280] sm:$0xff]
    %v195 = vld [vmem:[#allocation2 + $0x288] sm:$0xff]
    %v196 = vld [vmem:[#allocation2 + $0x290] sm:$0xff]
    %v197 = vld [vmem:[#allocation2 + $0x298] sm:$0xff]
    %v198 = vld [vmem:[#allocation2 + $0x2a0] sm:$0xff]
    %v199 = vld [vmem:[#allocation2 + $0x2a8] sm:$0xff]
    %v200 = vld [vmem:[#allocation2 + $0x2b0] sm:$0xff]
    %v201 = vld [vmem:[#allocation2 + $0x2b8] sm:$0xff]
    %v202 = vld [vmem:[#allocation2 + $0x2c0] sm:$0xff]
    %v203 = vld [vmem:[#allocation2 + $0x2c8] sm:$0xff]
    %v204 = vld [vmem:[#allocation2 + $0x2d0] sm:$0xff]
    %v205 = vld [vmem:[#allocation2 + $0x2d8] sm:$0xff]
    %v206 = vld [vmem:[#allocation2 + $0x2e0] sm:$0xff]
    %v207 = vld [vmem:[#allocation2 + $0x2e8] sm:$0xff]
    %v208 = vld [vmem:[#allocation2 + $0x2f0] sm:$0xff]
    %v209 = vld [vmem:[#allocation2 + $0x2f8] sm:$0xff]
    %v210 = vld [vmem:[#allocation2 + $0x300] sm:$0xff]
    %v211 = vld [vmem:[#allocation2 + $0x308] sm:$0xff]
    %v212 = vld [vmem:[#allocation2 + $0x310] sm:$0xff]
    %v213 = vld [vmem:[#allocation2 + $0x318] sm:$0xff]
    %v214 = vld [vmem:[#allocation2 + $0x320] sm:$0xff]
    %v215 = vld [vmem:[#allocation2 + $0x328] sm:$0xff]
    %v216 = vld [vmem:[#allocation2 + $0x330] sm:$0xff]
    %v217 = vld [vmem:[#allocation2 + $0x338] sm:$0xff]
    %v218 = vld [vmem:[#allocation2 + $0x340] sm:$0xff]
    %v219 = vld [vmem:[#allocation2 + $0x348] sm:$0xff]
    %v220 = vld [vmem:[#allocation2 + $0x350] sm:$0xff]
    %v221 = vld [vmem:[#allocation2 + $0x358] sm:$0xff]
    %v222 = vld [vmem:[#allocation2 + $0x360] sm:$0xff]
    %v223 = vld [vmem:[#allocation2 + $0x368] sm:$0xff]
    %v224 = vld [vmem:[#allocation2 + $0x370] sm:$0xff]
    %v225 = vld [vmem:[#allocation2 + $0x378] sm:$0xff]
    %v226 = vld [vmem:[#allocation2 + $0x380] sm:$0xff]
    %v227 = vld [vmem:[#allocation2 + $0x388] sm:$0xff]
    %v228 = vld [vmem:[#allocation2 + $0x390] sm:$0xff]
    %v229 = vld [vmem:[#allocation2 + $0x398] sm:$0xff]
    %v230 = vld [vmem:[#allocation2 + $0x3a0] sm:$0xff]
    %v231 = vld [vmem:[#allocation2 + $0x3a8] sm:$0xff]
    %v232 = vld [vmem:[#allocation2 + $0x3b0] sm:$0xff]
    %v233 = vld [vmem:[#allocation2 + $0x3b8] sm:$0xff]
    %v234 = vld [vmem:[#allocation2 + $0x3c0] sm:$0xff]
    %v235 = vld [vmem:[#allocation2 + $0x3c8] sm:$0xff]
    %v236 = vld [vmem:[#allocation2 + $0x3d0] sm:$0xff]
    %v237 = vld [vmem:[#allocation2 + $0x3d8] sm:$0xff]
    %v238 = vld [vmem:[#allocation2 + $0x3e0] sm:$0xff]
    %v239 = vld [vmem:[#allocation2 + $0x3e8] sm:$0xff]
    %v240 = vld [vmem:[#allocation2 + $0x3f0] sm:$0xff]
    %v241 = vld [vmem:[#allocation2 + $0x3f8] sm:$0xff]
    %v242 = vld [vmem:[%s2] sm:$0xf]
    %v244 = vlaneseq
    %v245 = vshrl.u32 %v244, 7
    %v246 = vsub.s32 0, %v245
    %v247 = vrot.slane %v242, %v246
    %v248 = vlaneseq
    %v249 = vshrl.u32 %v248, 7
    %v250 = vsub.s32 1, %v249
    %v251 = vrot.slane %v242, %v250
    %v252 = vlaneseq
    %v253 = vshrl.u32 %v252, 7
    %v254 = vsub.s32 2, %v253
    %v255 = vrot.slane %v242, %v254
    %v256 = vlaneseq
    %v257 = vshrl.u32 %v256, 7
    %v258 = vsub.s32 3, %v257
    %v259 = vrot.slane %v242, %v258
    %v266 = vunpack.c.l.s4 1983009808
    %v267 = vunpack.c.0.s8 %v266
    %v268 = vlaneseq
    %v269 = vshrl.u32 %v268, 7
    %v270 = vsub.s32 %v267, %v269
    %v271 = vrot.slane %v113, %v270
    %v272 = vcombine.high %v271, %v271
    %275 = vmatprep.subr.mxu0 %v175
    %276 = vmatpush1.msra.mxu0 %v174
    %277 = vmatprep.subr.mxu0 %v171
    %278 = vmatpush1.msra.mxu0 %v170
    %279 = vmatprep.subr.mxu0 %v167
    %280 = vmatpush1.msra.mxu0 %v166
    %281 = vmatprep.subr.mxu0 %v163
    %282 = vmatpush1.msra.mxu0 %v162
    %283 = vmatprep.subr.mxu0 %v159
    %284 = vmatpush1.msra.mxu0 %v158
    %285 = vmatprep.subr.mxu0 %v155
    %286 = vmatpush1.msra.mxu0 %v154
    %287 = vmatprep.subr.mxu0 %v151
    %288 = vmatpush1.msra.mxu0 %v150
    %289 = vmatprep.subr.mxu0 %v147
    %290 = vmatpush1.msra.mxu0 %v146
    %291 = vmatprep.subr.mxu0 %v143
    %292 = vmatpush1.msra.mxu0 %v142
    %293 = vmatprep.subr.mxu0 %v139
    %294 = vmatpush1.msra.mxu0 %v138
    %295 = vmatprep.subr.mxu0 %v135
    %296 = vmatpush1.msra.mxu0 %v134
    %297 = vmatprep.subr.mxu0 %v131
    %298 = vmatpush1.msra.mxu0 %v130
    %299 = vmatprep.subr.mxu0 %v127
    %300 = vmatpush1.msra.mxu0 %v126
    %301 = vmatprep.subr.mxu0 %v123
    %302 = vmatpush1.msra.mxu0 %v122
    %303 = vmatprep.subr.mxu0 %v119
    %304 = vmatpush1.msra.mxu0 %v118
    %305 = vmatprep.subr.mxu0 %v115
    %306 = vmatpush1.msra.mxu0 %v114
    %307 = vmatprep.subr.mxu0 %v239
    %308 = vmatpush2.msra.mxu0 %v238
    %309 = vmatprep.subr.mxu0 %v235
    %310 = vmatpush2.msra.mxu0 %v234
    %311 = vmatprep.subr.mxu0 %v231
    %312 = vmatpush2.msra.mxu0 %v230
    %313 = vmatprep.subr.mxu0 %v227
    %314 = vmatpush2.msra.mxu0 %v226
    %315 = vmatprep.subr.mxu0 %v223
    %316 = vmatpush2.msra.mxu0 %v222
    %317 = vmatprep.subr.mxu0 %v219
    %318 = vmatpush2.msra.mxu0 %v218
    %319 = vmatprep.subr.mxu0 %v215
    %320 = vmatpush2.msra.mxu0 %v214
    %321 = vmatprep.subr.mxu0 %v211
    %322 = vmatpush2.msra.mxu0 %v210
    %323 = vmatprep.subr.mxu0 %v207
    %324 = vmatpush2.msra.mxu0 %v206
    %325 = vmatprep.subr.mxu0 %v203
    %326 = vmatpush2.msra.mxu0 %v202
    %327 = vmatprep.subr.mxu0 %v199
    %328 = vmatpush2.msra.mxu0 %v198
    %329 = vmatprep.subr.mxu0 %v195
    %330 = vmatpush2.msra.mxu0 %v194
    %331 = vmatprep.subr.mxu0 %v191
    %332 = vmatpush2.msra.mxu0 %v190
    %333 = vmatprep.subr.mxu0 %v187
    %334 = vmatpush2.msra.mxu0 %v186
    %335 = vmatprep.subr.mxu0 %v183
    %336 = vmatpush2.msra.mxu0 %v182
    %337 = vmatprep.subr.mxu0 %v179
    %338 = vmatpush2.msra.mxu0 %v178
    %339 = vmatprep.mubr.f32.mxu0 %v272
    %340 = vmatmul.mubr.f32.gmra.mxu0 %v271
    %v341 = vpop.f32.mrf.mxu0
    %v342 = vadd.f32 %v247, %v341
    %v343 = vpop.f32.mrf.mxu0
    %v344 = vadd.f32 %v251, %v343
    %345 = vdwg.mxu0
    %346 = vmatprep.subr.mxu0 %v177
    %347 = vmatpush1.msra.mxu0 %v176
    %348 = vmatprep.subr.mxu0 %v173
    %349 = vmatpush1.msra.mxu0 %v172
    %350 = vmatprep.subr.mxu0 %v169
    %351 = vmatpush1.msra.mxu0 %v168
    %352 = vmatprep.subr.mxu0 %v165
    %353 = vmatpush1.msra.mxu0 %v164
    %354 = vmatprep.subr.mxu0 %v161
    %355 = vmatpush1.msra.mxu0 %v160
    %356 = vmatprep.subr.mxu0 %v157
    %357 = vmatpush1.msra.mxu0 %v156
    %358 = vmatprep.subr.mxu0 %v153
    %359 = vmatpush1.msra.mxu0 %v152
    %360 = vmatprep.subr.mxu0 %v149
    %361 = vmatpush1.msra.mxu0 %v148
    %362 = vmatprep.subr.mxu0 %v145
    %363 = vmatpush1.msra.mxu0 %v144
    %364 = vmatprep.subr.mxu0 %v141
    %365 = vmatpush1.msra.mxu0 %v140
    %366 = vmatprep.subr.mxu0 %v137
    %367 = vmatpush1.msra.mxu0 %v136
    %368 = vmatprep.subr.mxu0 %v133
    %369 = vmatpush1.msra.mxu0 %v132
    %370 = vmatprep.subr.mxu0 %v129
    %371 = vmatpush1.msra.mxu0 %v128
    %372 = vmatprep.subr.mxu0 %v125
    %373 = vmatpush1.msra.mxu0 %v124
    %374 = vmatprep.subr.mxu0 %v121
    %375 = vmatpush1.msra.mxu0 %v120
    %376 = vmatprep.subr.mxu0 %v117
    %377 = vmatpush1.msra.mxu0 %v116
    %378 = vmatprep.subr.mxu0 %v241
    %379 = vmatpush2.msra.mxu0 %v240
    %380 = vmatprep.subr.mxu0 %v237
    %381 = vmatpush2.msra.mxu0 %v236
    %382 = vmatprep.subr.mxu0 %v233
    %383 = vmatpush2.msra.mxu0 %v232
    %384 = vmatprep.subr.mxu0 %v229
    %385 = vmatpush2.msra.mxu0 %v228
    %386 = vmatprep.subr.mxu0 %v225
    %387 = vmatpush2.msra.mxu0 %v224
    %388 = vmatprep.subr.mxu0 %v221
    %389 = vmatpush2.msra.mxu0 %v220
    %390 = vmatprep.subr.mxu0 %v217
    %391 = vmatpush2.msra.mxu0 %v216
    %392 = vmatprep.subr.mxu0 %v213
    %393 = vmatpush2.msra.mxu0 %v212
    %394 = vmatprep.subr.mxu0 %v209
    %395 = vmatpush2.msra.mxu0 %v208
    %396 = vmatprep.subr.mxu0 %v205
    %397 = vmatpush2.msra.mxu0 %v204
    %398 = vmatprep.subr.mxu0 %v201
    %399 = vmatpush2.msra.mxu0 %v200
    %400 = vmatprep.subr.mxu0 %v197
    %401 = vmatpush2.msra.mxu0 %v196
    %402 = vmatprep.subr.mxu0 %v193
    %403 = vmatpush2.msra.mxu0 %v192
    %404 = vmatprep.subr.mxu0 %v189
    %405 = vmatpush2.msra.mxu0 %v188
    %406 = vmatprep.subr.mxu0 %v185
    %407 = vmatpush2.msra.mxu0 %v184
    %408 = vmatprep.subr.mxu0 %v181
    %409 = vmatpush2.msra.mxu0 %v180
    %410 = vmatprep.mubr.f32.mxu0 %v272
    %411 = vmatmul.mubr.f32.gmra.mxu0 %v271
    %v412 = vpop.f32.mrf.mxu0
    %v413 = vadd.f32 %v255, %v412
    %v414 = vpop.f32.mrf.mxu0
    %v415 = vadd.f32 %v259, %v414
    %416 = vdwg.mxu0
    %v417 = vld [vmem:[#allocation7] sm:$0xff]
    %v418 = vld [vmem:[#allocation7 + $0x8] sm:$0xff]
    %v419 = vld [vmem:[#allocation7 + $0x10] sm:$0xff]
    %v420 = vld [vmem:[#allocation7 + $0x18] sm:$0xff]
    %v421 = vld [vmem:[#allocation7 + $0x20] sm:$0xff]
    %v422 = vld [vmem:[#allocation7 + $0x28] sm:$0xff]
    %v423 = vld [vmem:[#allocation7 + $0x30] sm:$0xff]
    %v424 = vld [vmem:[#allocation7 + $0x38] sm:$0xff]
    %v425 = vld [vmem:[#allocation7 + $0x40] sm:$0xff]
    %v426 = vld [vmem:[#allocation7 + $0x48] sm:$0xff]
    %v427 = vld [vmem:[#allocation7 + $0x50] sm:$0xff]
    %v428 = vld [vmem:[#allocation7 + $0x58] sm:$0xff]
    %v429 = vld [vmem:[#allocation7 + $0x60] sm:$0xff]
    %v430 = vld [vmem:[#allocation7 + $0x68] sm:$0xff]
    %v431 = vld [vmem:[#allocation7 + $0x70] sm:$0xff]
    %v432 = vld [vmem:[#allocation7 + $0x78] sm:$0xff]
    %v433 = vld [vmem:[#allocation7 + $0x80] sm:$0xff]
    %v434 = vld [vmem:[#allocation7 + $0x88] sm:$0xff]
    %v435 = vld [vmem:[#allocation7 + $0x90] sm:$0xff]
    %v436 = vld [vmem:[#allocation7 + $0x98] sm:$0xff]
    %v437 = vld [vmem:[#allocation7 + $0xa0] sm:$0xff]
    %v438 = vld [vmem:[#allocation7 + $0xa8] sm:$0xff]
    %v439 = vld [vmem:[#allocation7 + $0xb0] sm:$0xff]
    %v440 = vld [vmem:[#allocation7 + $0xb8] sm:$0xff]
    %v441 = vld [vmem:[#allocation7 + $0xc0] sm:$0xff]
    %v442 = vld [vmem:[#allocation7 + $0xc8] sm:$0xff]
    %v443 = vld [vmem:[#allocation7 + $0xd0] sm:$0xff]
    %v444 = vld [vmem:[#allocation7 + $0xd8] sm:$0xff]
    %v445 = vld [vmem:[#allocation7 + $0xe0] sm:$0xff]
    %v446 = vld [vmem:[#allocation7 + $0xe8] sm:$0xff]
    %v447 = vld [vmem:[#allocation7 + $0xf0] sm:$0xff]
    %v448 = vld [vmem:[#allocation7 + $0xf8] sm:$0xff]
    %v449 = vld [vmem:[#allocation7 + $0x100] sm:$0xff]
    %v450 = vld [vmem:[#allocation7 + $0x108] sm:$0xff]
    %v451 = vld [vmem:[#allocation7 + $0x110] sm:$0xff]
    %v452 = vld [vmem:[#allocation7 + $0x118] sm:$0xff]
    %v453 = vld [vmem:[#allocation7 + $0x120] sm:$0xff]
    %v454 = vld [vmem:[#allocation7 + $0x128] sm:$0xff]
    %v455 = vld [vmem:[#allocation7 + $0x130] sm:$0xff]
    %v456 = vld [vmem:[#allocation7 + $0x138] sm:$0xff]
    %v457 = vld [vmem:[#allocation7 + $0x140] sm:$0xff]
    %v458 = vld [vmem:[#allocation7 + $0x148] sm:$0xff]
    %v459 = vld [vmem:[#allocation7 + $0x150] sm:$0xff]
    %v460 = vld [vmem:[#allocation7 + $0x158] sm:$0xff]
    %v461 = vld [vmem:[#allocation7 + $0x160] sm:$0xff]
    %v462 = vld [vmem:[#allocation7 + $0x168] sm:$0xff]
    %v463 = vld [vmem:[#allocation7 + $0x170] sm:$0xff]
    %v464 = vld [vmem:[#allocation7 + $0x178] sm:$0xff]
    %v465 = vld [vmem:[#allocation7 + $0x180] sm:$0xff]
    %v466 = vld [vmem:[#allocation7 + $0x188] sm:$0xff]
    %v467 = vld [vmem:[#allocation7 + $0x190] sm:$0xff]
    %v468 = vld [vmem:[#allocation7 + $0x198] sm:$0xff]
    %v469 = vld [vmem:[#allocation7 + $0x1a0] sm:$0xff]
    %v470 = vld [vmem:[#allocation7 + $0x1a8] sm:$0xff]
    %v471 = vld [vmem:[#allocation7 + $0x1b0] sm:$0xff]
    %v472 = vld [vmem:[#allocation7 + $0x1b8] sm:$0xff]
    %v473 = vld [vmem:[#allocation7 + $0x1c0] sm:$0xff]
    %v474 = vld [vmem:[#allocation7 + $0x1c8] sm:$0xff]
    %v475 = vld [vmem:[#allocation7 + $0x1d0] sm:$0xff]
    %v476 = vld [vmem:[#allocation7 + $0x1d8] sm:$0xff]
    %v477 = vld [vmem:[#allocation7 + $0x1e0] sm:$0xff]
    %v478 = vld [vmem:[#allocation7 + $0x1e8] sm:$0xff]
    %v479 = vld [vmem:[#allocation7 + $0x1f0] sm:$0xff]
    %v480 = vld [vmem:[#allocation7 + $0x1f8] sm:$0xff]
    %481 = vmatprep.subr.mxu0 %v448
    %482 = vmatpush1.msra.mxu0 %v447
    %483 = vmatprep.subr.mxu0 %v446
    %484 = vmatpush1.msra.mxu0 %v445
    %485 = vmatprep.subr.mxu0 %v444
    %486 = vmatpush1.msra.mxu0 %v443
    %487 = vmatprep.subr.mxu0 %v442
    %488 = vmatpush1.msra.mxu0 %v441
    %489 = vmatprep.subr.mxu0 %v440
    %490 = vmatpush1.msra.mxu0 %v439
    %491 = vmatprep.subr.mxu0 %v438
    %492 = vmatpush1.msra.mxu0 %v437
    %493 = vmatprep.subr.mxu0 %v436
    %494 = vmatpush1.msra.mxu0 %v435
    %495 = vmatprep.subr.mxu0 %v434
    %496 = vmatpush1.msra.mxu0 %v433
    %497 = vmatprep.subr.mxu0 %v432
    %498 = vmatpush1.msra.mxu0 %v431
    %499 = vmatprep.subr.mxu0 %v430
    %500 = vmatpush1.msra.mxu0 %v429
    %501 = vmatprep.subr.mxu0 %v428
    %502 = vmatpush1.msra.mxu0 %v427
    %503 = vmatprep.subr.mxu0 %v426
    %504 = vmatpush1.msra.mxu0 %v425
    %505 = vmatprep.subr.mxu0 %v424
    %506 = vmatpush1.msra.mxu0 %v423
    %507 = vmatprep.subr.mxu0 %v422
    %508 = vmatpush1.msra.mxu0 %v421
    %509 = vmatprep.subr.mxu0 %v420
    %510 = vmatpush1.msra.mxu0 %v419
    %511 = vmatprep.subr.mxu0 %v418
    %512 = vmatpush1.msra.mxu0 %v417
    %513 = vmatprep.subr.mxu0 %v480
    %514 = vmatpush2.msra.mxu0 %v479
    %515 = vmatprep.subr.mxu0 %v478
    %516 = vmatpush2.msra.mxu0 %v477
    %517 = vmatprep.subr.mxu0 %v476
    %518 = vmatpush2.msra.mxu0 %v475
    %519 = vmatprep.subr.mxu0 %v474
    %520 = vmatpush2.msra.mxu0 %v473
    %521 = vmatprep.subr.mxu0 %v472
    %522 = vmatpush2.msra.mxu0 %v471
    %523 = vmatprep.subr.mxu0 %v470
    %524 = vmatpush2.msra.mxu0 %v469
    %525 = vmatprep.subr.mxu0 %v468
    %526 = vmatpush2.msra.mxu0 %v467
    %527 = vmatprep.subr.mxu0 %v466
    %528 = vmatpush2.msra.mxu0 %v465
    %529 = vmatprep.subr.mxu0 %v464
    %530 = vmatpush2.msra.mxu0 %v463
    %531 = vmatprep.subr.mxu0 %v462
    %532 = vmatpush2.msra.mxu0 %v461
    %533 = vmatprep.subr.mxu0 %v460
    %534 = vmatpush2.msra.mxu0 %v459
    %535 = vmatprep.subr.mxu0 %v458
    %536 = vmatpush2.msra.mxu0 %v457
    %537 = vmatprep.subr.mxu0 %v456
    %538 = vmatpush2.msra.mxu0 %v455
    %539 = vmatprep.subr.mxu0 %v454
    %540 = vmatpush2.msra.mxu0 %v453
    %541 = vmatprep.subr.mxu0 %v452
    %542 = vmatpush2.msra.mxu0 %v451
    %543 = vmatprep.subr.mxu0 %v450
    %544 = vmatpush2.msra.mxu0 %v449
    %545 = vmatprep.mubr.f32.mxu0 %v344
    %546 = vmatmul.mubr.f32.gmra.mxu0 %v342
    %v547 = vpop.f32.mrf.mxu0
    %v548 = vadd.f32 0.0, %v547
    %v549 = vpop.f32.mrf.mxu0
    %v550 = vadd.f32 0.0, %v549
    %551 = vdwg.mxu0
    %v552 = vsub.f32 %v342, %v548
    %v553 = vsub.f32 %v344, %v550
    %v554 = vmul.f32 %v552, %v552
    %v555 = vmul.f32 %v553, %v553
    %556 = vmatprep.subr.mxu0 %v448
    %557 = vmatpush1.msra.mxu0 %v447
    %558 = vmatprep.subr.mxu0 %v446
    %559 = vmatpush1.msra.mxu0 %v445
    %560 = vmatprep.subr.mxu0 %v444
    %561 = vmatpush1.msra.mxu0 %v443
    %562 = vmatprep.subr.mxu0 %v442
    %563 = vmatpush1.msra.mxu0 %v441
    %564 = vmatprep.subr.mxu0 %v440
    %565 = vmatpush1.msra.mxu0 %v439
    %566 = vmatprep.subr.mxu0 %v438
    %567 = vmatpush1.msra.mxu0 %v437
    %568 = vmatprep.subr.mxu0 %v436
    %569 = vmatpush1.msra.mxu0 %v435
    %570 = vmatprep.subr.mxu0 %v434
    %571 = vmatpush1.msra.mxu0 %v433
    %572 = vmatprep.subr.mxu0 %v432
    %573 = vmatpush1.msra.mxu0 %v431
    %574 = vmatprep.subr.mxu0 %v430
    %575 = vmatpush1.msra.mxu0 %v429
    %576 = vmatprep.subr.mxu0 %v428
    %577 = vmatpush1.msra.mxu0 %v427
    %578 = vmatprep.subr.mxu0 %v426
    %579 = vmatpush1.msra.mxu0 %v425
    %580 = vmatprep.subr.mxu0 %v424
    %581 = vmatpush1.msra.mxu0 %v423
    %582 = vmatprep.subr.mxu0 %v422
    %583 = vmatpush1.msra.mxu0 %v421
    %584 = vmatprep.subr.mxu0 %v420
    %585 = vmatpush1.msra.mxu0 %v419
    %586 = vmatprep.subr.mxu0 %v418
    %587 = vmatpush1.msra.mxu0 %v417
    %588 = vmatprep.subr.mxu0 %v480
    %589 = vmatpush2.msra.mxu0 %v479
    %590 = vmatprep.subr.mxu0 %v478
    %591 = vmatpush2.msra.mxu0 %v477
    %592 = vmatprep.subr.mxu0 %v476
    %593 = vmatpush2.msra.mxu0 %v475
    %594 = vmatprep.subr.mxu0 %v474
    %595 = vmatpush2.msra.mxu0 %v473
    %596 = vmatprep.subr.mxu0 %v472
    %597 = vmatpush2.msra.mxu0 %v471
    %598 = vmatprep.subr.mxu0 %v470
    %599 = vmatpush2.msra.mxu0 %v469
    %600 = vmatprep.subr.mxu0 %v468
    %601 = vmatpush2.msra.mxu0 %v467
    %602 = vmatprep.subr.mxu0 %v466
    %603 = vmatpush2.msra.mxu0 %v465
    %604 = vmatprep.subr.mxu0 %v464
    %605 = vmatpush2.msra.mxu0 %v463
    %606 = vmatprep.subr.mxu0 %v462
    %607 = vmatpush2.msra.mxu0 %v461
    %608 = vmatprep.subr.mxu0 %v460
    %609 = vmatpush2.msra.mxu0 %v459
    %610 = vmatprep.subr.mxu0 %v458
    %611 = vmatpush2.msra.mxu0 %v457
    %612 = vmatprep.subr.mxu0 %v456
    %613 = vmatpush2.msra.mxu0 %v455
    %614 = vmatprep.subr.mxu0 %v454
    %615 = vmatpush2.msra.mxu0 %v453
    %616 = vmatprep.subr.mxu0 %v452
    %617 = vmatpush2.msra.mxu0 %v451
    %618 = vmatprep.subr.mxu0 %v450
    %619 = vmatpush2.msra.mxu0 %v449
    %620 = vmatprep.mubr.f32.mxu0 %v555
    %621 = vmatmul.mubr.f32.gmra.mxu0 %v554
    %v622 = vpop.f32.mrf.mxu0
    %v623 = vadd.f32 1e-05, %v622
    %v624 = vpop.f32.mrf.mxu0
    %v625 = vadd.f32 1e-05, %v624
    %626 = vdwg.mxu0
    %v627 = vrsqrt.pop %v623
    %v628 = vrsqrt.pop %v625
    %v629 = vmul.f32 %v552, %v627
    %v630 = vmul.f32 %v553, %v628
    %vm631 = vcmp.ge.f32.partialorder %v629, 0.0
    %vm632 = vcmp.ge.f32.partialorder %v630, 0.0
    %v633 = vmul.f32 %v629, 0.25
    %v634 = vmul.f32 %v630, 0.25
    %v635 = vsel %vm631, %v629, %v633
    %v636 = vsel %vm632, %v630, %v634
    %v637 = vld [vmem:[#allocation5] sm:$0xff]
    %v638 = vld [vmem:[#allocation5 + $0x8] sm:$0xff]
    %v639 = vld [vmem:[#allocation5 + $0x10] sm:$0xff]
    %v640 = vld [vmem:[#allocation5 + $0x18] sm:$0xff]
    %v641 = vld [vmem:[#allocation5 + $0x20] sm:$0xff]
    %v642 = vld [vmem:[#allocation5 + $0x28] sm:$0xff]
    %v643 = vld [vmem:[#allocation5 + $0x30] sm:$0xff]
    %v644 = vld [vmem:[#allocation5 + $0x38] sm:$0xff]
    %v645 = vld [vmem:[#allocation5 + $0x40] sm:$0xff]
    %v646 = vld [vmem:[#allocation5 + $0x48] sm:$0xff]
    %v647 = vld [vmem:[#allocation5 + $0x50] sm:$0xff]
    %v648 = vld [vmem:[#allocation5 + $0x58] sm:$0xff]
    %v649 = vld [vmem:[#allocation5 + $0x60] sm:$0xff]
    %v650 = vld [vmem:[#allocation5 + $0x68] sm:$0xff]
    %v651 = vld [vmem:[#allocation5 + $0x70] sm:$0xff]
    %v652 = vld [vmem:[#allocation5 + $0x78] sm:$0xff]
    %v653 = vld [vmem:[#allocation5 + $0x80] sm:$0xff]
    %v654 = vld [vmem:[#allocation5 + $0x88] sm:$0xff]
    %v655 = vld [vmem:[#allocation5 + $0x90] sm:$0xff]
    %v656 = vld [vmem:[#allocation5 + $0x98] sm:$0xff]
    %v657 = vld [vmem:[#allocation5 + $0xa0] sm:$0xff]
    %v658 = vld [vmem:[#allocation5 + $0xa8] sm:$0xff]
    %v659 = vld [vmem:[#allocation5 + $0xb0] sm:$0xff]
    %v660 = vld [vmem:[#allocation5 + $0xb8] sm:$0xff]
    %v661 = vld [vmem:[#allocation5 + $0xc0] sm:$0xff]
    %v662 = vld [vmem:[#allocation5 + $0xc8] sm:$0xff]
    %v663 = vld [vmem:[#allocation5 + $0xd0] sm:$0xff]
    %v664 = vld [vmem:[#allocation5 + $0xd8] sm:$0xff]
    %v665 = vld [vmem:[#allocation5 + $0xe0] sm:$0xff]
    %v666 = vld [vmem:[#allocation5 + $0xe8] sm:$0xff]
    %v667 = vld [vmem:[#allocation5 + $0xf0] sm:$0xff]
    %v668 = vld [vmem:[#allocation5 + $0xf8] sm:$0xff]
    %v669 = vld [vmem:[#allocation5 + $0x100] sm:$0xff]
    %v670 = vld [vmem:[#allocation5 + $0x108] sm:$0xff]
    %v671 = vld [vmem:[#allocation5 + $0x110] sm:$0xff]
    %v672 = vld [vmem:[#allocation5 + $0x118] sm:$0xff]
    %v673 = vld [vmem:[#allocation5 + $0x120] sm:$0xff]
    %v674 = vld [vmem:[#allocation5 + $0x128] sm:$0xff]
    %v675 = vld [vmem:[#allocation5 + $0x130] sm:$0xff]
    %v676 = vld [vmem:[#allocation5 + $0x138] sm:$0xff]
    %v677 = vld [vmem:[#allocation5 + $0x140] sm:$0xff]
    %v678 = vld [vmem:[#allocation5 + $0x148] sm:$0xff]
    %v679 = vld [vmem:[#allocation5 + $0x150] sm:$0xff]
    %v680 = vld [vmem:[#allocation5 + $0x158] sm:$0xff]
    %v681 = vld [vmem:[#allocation5 + $0x160] sm:$0xff]
    %v682 = vld [vmem:[#allocation5 + $0x168] sm:$0xff]
    %v683 = vld [vmem:[#allocation5 + $0x170] sm:$0xff]
    %v684 = vld [vmem:[#allocation5 + $0x178] sm:$0xff]
    %v685 = vld [vmem:[#allocation5 + $0x180] sm:$0xff]
    %v686 = vld [vmem:[#allocation5 + $0x188] sm:$0xff]
    %v687 = vld [vmem:[#allocation5 + $0x190] sm:$0xff]
    %v688 = vld [vmem:[#allocation5 + $0x198] sm:$0xff]
    %v689 = vld [vmem:[#allocation5 + $0x1a0] sm:$0xff]
    %v690 = vld [vmem:[#allocation5 + $0x1a8] sm:$0xff]
    %v691 = vld [vmem:[#allocation5 + $0x1b0] sm:$0xff]
    %v692 = vld [vmem:[#allocation5 + $0x1b8] sm:$0xff]
    %v693 = vld [vmem:[#allocation5 + $0x1c0] sm:$0xff]
    %v694 = vld [vmem:[#allocation5 + $0x1c8] sm:$0xff]
    %v695 = vld [vmem:[#allocation5 + $0x1d0] sm:$0xff]
    %v696 = vld [vmem:[#allocation5 + $0x1d8] sm:$0xff]
    %v697 = vld [vmem:[#allocation5 + $0x1e0] sm:$0xff]
    %v698 = vld [vmem:[#allocation5 + $0x1e8] sm:$0xff]
    %v699 = vld [vmem:[#allocation5 + $0x1f0] sm:$0xff]
    %v700 = vld [vmem:[#allocation5 + $0x1f8] sm:$0xff]
    %v701 = vld [vmem:[%s4] sm:$0x3]
    %v703 = vlaneseq
    %v704 = vshrl.u32 %v703, 7
    %v705 = vsub.s32 0, %v704
    %v706 = vrot.slane %v701, %v705
    %v707 = vlaneseq
    %v708 = vshrl.u32 %v707, 7
    %v709 = vsub.s32 1, %v708
    %v710 = vrot.slane %v701, %v709
    %713 = vmatprep.subr.mxu0 %v668
    %714 = vmatpush1.msra.mxu0 %v667
    %715 = vmatprep.subr.mxu0 %v666
    %716 = vmatpush1.msra.mxu0 %v665
    %717 = vmatprep.subr.mxu0 %v664
    %718 = vmatpush1.msra.mxu0 %v663
    %719 = vmatprep.subr.mxu0 %v662
    %720 = vmatpush1.msra.mxu0 %v661
    %721 = vmatprep.subr.mxu0 %v660
    %722 = vmatpush1.msra.mxu0 %v659
    %723 = vmatprep.subr.mxu0 %v658
    %724 = vmatpush1.msra.mxu0 %v657
    %725 = vmatprep.subr.mxu0 %v656
    %726 = vmatpush1.msra.mxu0 %v655
    %727 = vmatprep.subr.mxu0 %v654
    %728 = vmatpush1.msra.mxu0 %v653
    %729 = vmatprep.subr.mxu0 %v652
    %730 = vmatpush1.msra.mxu0 %v651
    %731 = vmatprep.subr.mxu0 %v650
    %732 = vmatpush1.msra.mxu0 %v649
    %733 = vmatprep.subr.mxu0 %v648
    %734 = vmatpush1.msra.mxu0 %v647
    %735 = vmatprep.subr.mxu0 %v646
    %736 = vmatpush1.msra.mxu0 %v645
    %737 = vmatprep.subr.mxu0 %v644
    %738 = vmatpush1.msra.mxu0 %v643
    %739 = vmatprep.subr.mxu0 %v642
    %740 = vmatpush1.msra.mxu0 %v641
    %741 = vmatprep.subr.mxu0 %v640
    %742 = vmatpush1.msra.mxu0 %v639
    %743 = vmatprep.subr.mxu0 %v638
    %744 = vmatpush1.msra.mxu0 %v637
    %745 = vmatprep.subr.mxu0 %v700
    %746 = vmatpush2.msra.mxu0 %v699
    %747 = vmatprep.subr.mxu0 %v698
    %748 = vmatpush2.msra.mxu0 %v697
    %749 = vmatprep.subr.mxu0 %v696
    %750 = vmatpush2.msra.mxu0 %v695
    %751 = vmatprep.subr.mxu0 %v694
    %752 = vmatpush2.msra.mxu0 %v693
    %753 = vmatprep.subr.mxu0 %v692
    %754 = vmatpush2.msra.mxu0 %v691
    %755 = vmatprep.subr.mxu0 %v690
    %756 = vmatpush2.msra.mxu0 %v689
    %757 = vmatprep.subr.mxu0 %v688
    %758 = vmatpush2.msra.mxu0 %v687
    %759 = vmatprep.subr.mxu0 %v686
    %760 = vmatpush2.msra.mxu0 %v685
    %761 = vmatprep.subr.mxu0 %v684
    %762 = vmatpush2.msra.mxu0 %v683
    %763 = vmatprep.subr.mxu0 %v682
    %764 = vmatpush2.msra.mxu0 %v681
    %765 = vmatprep.subr.mxu0 %v680
    %766 = vmatpush2.msra.mxu0 %v679
    %767 = vmatprep.subr.mxu0 %v678
    %768 = vmatpush2.msra.mxu0 %v677
    %769 = vmatprep.subr.mxu0 %v676
    %770 = vmatpush2.msra.mxu0 %v675
    %771 = vmatprep.subr.mxu0 %v674
    %772 = vmatpush2.msra.mxu0 %v673
    %773 = vmatprep.subr.mxu0 %v672
    %774 = vmatpush2.msra.mxu0 %v671
    %775 = vmatprep.subr.mxu0 %v670
    %776 = vmatpush2.msra.mxu0 %v669
    %777 = vmatprep.mubr.f32.mxu0 %v636
    %778 = vmatmul.mubr.f32.gmra.mxu0 %v635
    %v779 = vpop.f32.mrf.mxu0
    %v780 = vadd.f32 %v706, %v779
    %v781 = vpop.f32.mrf.mxu0
    %v782 = vadd.f32 %v710, %v781
    %783 = vdwg.mxu0
    %784 = vmatprep.subr.mxu0 %v448
    %785 = vmatpush1.msra.mxu0 %v447
    %786 = vmatprep.subr.mxu0 %v446
    %787 = vmatpush1.msra.mxu0 %v445
    %788 = vmatprep.subr.mxu0 %v444
    %789 = vmatpush1.msra.mxu0 %v443
    %790 = vmatprep.subr.mxu0 %v442
    %791 = vmatpush1.msra.mxu0 %v441
    %792 = vmatprep.subr.mxu0 %v440
    %793 = vmatpush1.msra.mxu0 %v439
    %794 = vmatprep.subr.mxu0 %v438
    %795 = vmatpush1.msra.mxu0 %v437
    %796 = vmatprep.subr.mxu0 %v436
    %797 = vmatpush1.msra.mxu0 %v435
    %798 = vmatprep.subr.mxu0 %v434
    %799 = vmatpush1.msra.mxu0 %v433
    %800 = vmatprep.subr.mxu0 %v432
    %801 = vmatpush1.msra.mxu0 %v431
    %802 = vmatprep.subr.mxu0 %v430
    %803 = vmatpush1.msra.mxu0 %v429
    %804 = vmatprep.subr.mxu0 %v428
    %805 = vmatpush1.msra.mxu0 %v427
    %806 = vmatprep.subr.mxu0 %v426
    %807 = vmatpush1.msra.mxu0 %v425
    %808 = vmatprep.subr.mxu0 %v424
    %809 = vmatpush1.msra.mxu0 %v423
    %810 = vmatprep.subr.mxu0 %v422
    %811 = vmatpush1.msra.mxu0 %v421
    %812 = vmatprep.subr.mxu0 %v420
    %813 = vmatpush1.msra.mxu0 %v419
    %814 = vmatprep.subr.mxu0 %v418
    %815 = vmatpush1.msra.mxu0 %v417
    %816 = vmatprep.subr.mxu0 %v480
    %817 = vmatpush2.msra.mxu0 %v479
    %818 = vmatprep.subr.mxu0 %v478
    %819 = vmatpush2.msra.mxu0 %v477
    %820 = vmatprep.subr.mxu0 %v476
    %821 = vmatpush2.msra.mxu0 %v475
    %822 = vmatprep.subr.mxu0 %v474
    %823 = vmatpush2.msra.mxu0 %v473
    %824 = vmatprep.subr.mxu0 %v472
    %825 = vmatpush2.msra.mxu0 %v471
    %826 = vmatprep.subr.mxu0 %v470
    %827 = vmatpush2.msra.mxu0 %v469
    %828 = vmatprep.subr.mxu0 %v468
    %829 = vmatpush2.msra.mxu0 %v467
    %830 = vmatprep.subr.mxu0 %v466
    %831 = vmatpush2.msra.mxu0 %v465
    %832 = vmatprep.subr.mxu0 %v464
    %833 = vmatpush2.msra.mxu0 %v463
    %834 = vmatprep.subr.mxu0 %v462
    %835 = vmatpush2.msra.mxu0 %v461
    %836 = vmatprep.subr.mxu0 %v460
    %837 = vmatpush2.msra.mxu0 %v459
    %838 = vmatprep.subr.mxu0 %v458
    %839 = vmatpush2.msra.mxu0 %v457
    %840 = vmatprep.subr.mxu0 %v456
    %841 = vmatpush2.msra.mxu0 %v455
    %842 = vmatprep.subr.mxu0 %v454
    %843 = vmatpush2.msra.mxu0 %v453
    %844 = vmatprep.subr.mxu0 %v452
    %845 = vmatpush2.msra.mxu0 %v451
    %846 = vmatprep.subr.mxu0 %v450
    %847 = vmatpush2.msra.mxu0 %v449
    %848 = vmatprep.mubr.f32.mxu0 %v782
    %849 = vmatmul.mubr.f32.gmra.mxu0 %v780
    %v850 = vpop.f32.mrf.mxu0
    %v851 = vadd.f32 0.0, %v850
    %v852 = vpop.f32.mrf.mxu0
    %v853 = vadd.f32 0.0, %v852
    %854 = vdwg.mxu0
    %v855 = vsub.f32 %v780, %v851
    %v856 = vsub.f32 %v782, %v853
    %v857 = vmul.f32 %v855, %v855
    %v858 = vmul.f32 %v856, %v856
    %859 = vmatprep.subr.mxu0 %v448
    %860 = vmatpush1.msra.mxu0 %v447
    %861 = vmatprep.subr.mxu0 %v446
    %862 = vmatpush1.msra.mxu0 %v445
    %863 = vmatprep.subr.mxu0 %v444
    %864 = vmatpush1.msra.mxu0 %v443
    %865 = vmatprep.subr.mxu0 %v442
    %866 = vmatpush1.msra.mxu0 %v441
    %867 = vmatprep.subr.mxu0 %v440
    %868 = vmatpush1.msra.mxu0 %v439
    %869 = vmatprep.subr.mxu0 %v438
    %870 = vmatpush1.msra.mxu0 %v437
    %871 = vmatprep.subr.mxu0 %v436
    %872 = vmatpush1.msra.mxu0 %v435
    %873 = vmatprep.subr.mxu0 %v434
    %874 = vmatpush1.msra.mxu0 %v433
    %875 = vmatprep.subr.mxu0 %v432
    %876 = vmatpush1.msra.mxu0 %v431
    %877 = vmatprep.subr.mxu0 %v430
    %878 = vmatpush1.msra.mxu0 %v429
    %879 = vmatprep.subr.mxu0 %v428
    %880 = vmatpush1.msra.mxu0 %v427
    %881 = vmatprep.subr.mxu0 %v426
    %882 = vmatpush1.msra.mxu0 %v425
    %883 = vmatprep.subr.mxu0 %v424
    %884 = vmatpush1.msra.mxu0 %v423
    %885 = vmatprep.subr.mxu0 %v422
    %886 = vmatpush1.msra.mxu0 %v421
    %887 = vmatprep.subr.mxu0 %v420
    %888 = vmatpush1.msra.mxu0 %v419
    %889 = vmatprep.subr.mxu0 %v418
    %890 = vmatpush1.msra.mxu0 %v417
    %891 = vmatprep.subr.mxu0 %v480
    %892 = vmatpush2.msra.mxu0 %v479
    %893 = vmatprep.subr.mxu0 %v478
    %894 = vmatpush2.msra.mxu0 %v477
    %895 = vmatprep.subr.mxu0 %v476
    %896 = vmatpush2.msra.mxu0 %v475
    %897 = vmatprep.subr.mxu0 %v474
    %898 = vmatpush2.msra.mxu0 %v473
    %899 = vmatprep.subr.mxu0 %v472
    %900 = vmatpush2.msra.mxu0 %v471
    %901 = vmatprep.subr.mxu0 %v470
    %902 = vmatpush2.msra.mxu0 %v469
    %903 = vmatprep.subr.mxu0 %v468
    %904 = vmatpush2.msra.mxu0 %v467
    %905 = vmatprep.subr.mxu0 %v466
    %906 = vmatpush2.msra.mxu0 %v465
    %907 = vmatprep.subr.mxu0 %v464
    %908 = vmatpush2.msra.mxu0 %v463
    %909 = vmatprep.subr.mxu0 %v462
    %910 = vmatpush2.msra.mxu0 %v461
    %911 = vmatprep.subr.mxu0 %v460
    %912 = vmatpush2.msra.mxu0 %v459
    %913 = vmatprep.subr.mxu0 %v458
    %914 = vmatpush2.msra.mxu0 %v457
    %915 = vmatprep.subr.mxu0 %v456
    %916 = vmatpush2.msra.mxu0 %v455
    %917 = vmatprep.subr.mxu0 %v454
    %918 = vmatpush2.msra.mxu0 %v453
    %919 = vmatprep.subr.mxu0 %v452
    %920 = vmatpush2.msra.mxu0 %v451
    %921 = vmatprep.subr.mxu0 %v450
    %922 = vmatpush2.msra.mxu0 %v449
    %923 = vmatprep.mubr.f32.mxu0 %v858
    %924 = vmatmul.mubr.f32.gmra.mxu0 %v857
    %v925 = vpop.f32.mrf.mxu0
    %v926 = vadd.f32 1e-05, %v925
    %v927 = vpop.f32.mrf.mxu0
    %v928 = vadd.f32 1e-05, %v927
    %929 = vdwg.mxu0
    %v930 = vrsqrt.pop %v926
    %v931 = vrsqrt.pop %v928
    %v932 = vmul.f32 %v855, %v930
    %v933 = vmul.f32 %v856, %v931
    %vm934 = vcmp.ge.f32.partialorder %v932, 0.0
    %vm935 = vcmp.ge.f32.partialorder %v933, 0.0
    %v936 = vmul.f32 %v932, 0.25
    %v937 = vmul.f32 %v933, 0.25
    %v938 = vsel %vm934, %v932, %v936
    %v939 = vsel %vm935, %v933, %v937
    %v940 = vadd.f32 %v938, %v413
    %v941 = vadd.f32 %v939, %v415
    %v942 = vld [vmem:[#allocation8] sm:$0xff]
    %v943 = vld [vmem:[#allocation8 + $0x8] sm:$0xff]
    %v944 = vld [vmem:[#allocation8 + $0x10] sm:$0xff]
    %v945 = vld [vmem:[#allocation8 + $0x18] sm:$0xff]
    %v946 = vld [vmem:[#allocation8 + $0x20] sm:$0xff]
    %v947 = vld [vmem:[#allocation8 + $0x28] sm:$0xff]
    %v948 = vld [vmem:[#allocation8 + $0x30] sm:$0xff]
    %v949 = vld [vmem:[#allocation8 + $0x38] sm:$0xff]
    %v950 = vld [vmem:[#allocation8 + $0x40] sm:$0xff]
    %v951 = vld [vmem:[#allocation8 + $0x48] sm:$0xff]
    %v952 = vld [vmem:[#allocation8 + $0x50] sm:$0xff]
    %v953 = vld [vmem:[#allocation8 + $0x58] sm:$0xff]
    %v954 = vld [vmem:[#allocation8 + $0x60] sm:$0xff]
    %v955 = vld [vmem:[#allocation8 + $0x68] sm:$0xff]
    %v956 = vld [vmem:[#allocation8 + $0x70] sm:$0xff]
    %v957 = vld [vmem:[#allocation8 + $0x78] sm:$0xff]
    %v958 = vld [vmem:[#allocation8 + $0x80] sm:$0xff]
    %v959 = vld [vmem:[#allocation8 + $0x88] sm:$0xff]
    %v960 = vld [vmem:[#allocation8 + $0x90] sm:$0xff]
    %v961 = vld [vmem:[#allocation8 + $0x98] sm:$0xff]
    %v962 = vld [vmem:[#allocation8 + $0xa0] sm:$0xff]
    %v963 = vld [vmem:[#allocation8 + $0xa8] sm:$0xff]
    %v964 = vld [vmem:[#allocation8 + $0xb0] sm:$0xff]
    %v965 = vld [vmem:[#allocation8 + $0xb8] sm:$0xff]
    %v966 = vld [vmem:[#allocation8 + $0xc0] sm:$0xff]
    %v967 = vld [vmem:[#allocation8 + $0xc8] sm:$0xff]
    %v968 = vld [vmem:[#allocation8 + $0xd0] sm:$0xff]
    %v969 = vld [vmem:[#allocation8 + $0xd8] sm:$0xff]
    %v970 = vld [vmem:[#allocation8 + $0xe0] sm:$0xff]
    %v971 = vld [vmem:[#allocation8 + $0xe8] sm:$0xff]
    %v972 = vld [vmem:[#allocation8 + $0xf0] sm:$0xff]
    %v973 = vld [vmem:[#allocation8 + $0xf8] sm:$0xff]
    %v974 = vld [vmem:[#allocation8 + $0x100] sm:$0xff]
    %v975 = vld [vmem:[#allocation8 + $0x108] sm:$0xff]
    %v976 = vld [vmem:[#allocation8 + $0x110] sm:$0xff]
    %v977 = vld [vmem:[#allocation8 + $0x118] sm:$0xff]
    %v978 = vld [vmem:[#allocation8 + $0x120] sm:$0xff]
    %v979 = vld [vmem:[#allocation8 + $0x128] sm:$0xff]
    %v980 = vld [vmem:[#allocation8 + $0x130] sm:$0xff]
    %v981 = vld [vmem:[#allocation8 + $0x138] sm:$0xff]
    %v982 = vld [vmem:[#allocation8 + $0x140] sm:$0xff]
    %v983 = vld [vmem:[#allocation8 + $0x148] sm:$0xff]
    %v984 = vld [vmem:[#allocation8 + $0x150] sm:$0xff]
    %v985 = vld [vmem:[#allocation8 + $0x158] sm:$0xff]
    %v986 = vld [vmem:[#allocation8 + $0x160] sm:$0xff]
    %v987 = vld [vmem:[#allocation8 + $0x168] sm:$0xff]
    %v988 = vld [vmem:[#allocation8 + $0x170] sm:$0xff]
    %v989 = vld [vmem:[#allocation8 + $0x178] sm:$0xff]
    %v990 = vld [vmem:[#allocation8 + $0x180] sm:$0xff]
    %v991 = vld [vmem:[#allocation8 + $0x188] sm:$0xff]
    %v992 = vld [vmem:[#allocation8 + $0x190] sm:$0xff]
    %v993 = vld [vmem:[#allocation8 + $0x198] sm:$0xff]
    %v994 = vld [vmem:[#allocation8 + $0x1a0] sm:$0xff]
    %v995 = vld [vmem:[#allocation8 + $0x1a8] sm:$0xff]
    %v996 = vld [vmem:[#allocation8 + $0x1b0] sm:$0xff]
    %v997 = vld [vmem:[#allocation8 + $0x1b8] sm:$0xff]
    %v998 = vld [vmem:[#allocation8 + $0x1c0] sm:$0xff]
    %v999 = vld [vmem:[#allocation8 + $0x1c8] sm:$0xff]
    %v1000 = vld [vmem:[#allocation8 + $0x1d0] sm:$0xff]
    %v1001 = vld [vmem:[#allocation8 + $0x1d8] sm:$0xff]
    %v1002 = vld [vmem:[#allocation8 + $0x1e0] sm:$0xff]
    %v1003 = vld [vmem:[#allocation8 + $0x1e8] sm:$0xff]
    %v1004 = vld [vmem:[#allocation8 + $0x1f0] sm:$0xff]
    %v1005 = vld [vmem:[#allocation8 + $0x1f8] sm:$0xff]
    %v1006 = vld [vmem:[%s7] sm:$0x3]
    %v1008 = vlaneseq
    %v1009 = vshrl.u32 %v1008, 7
    %v1010 = vsub.s32 0, %v1009
    %v1011 = vrot.slane %v1006, %v1010
    %v1012 = vlaneseq
    %v1013 = vshrl.u32 %v1012, 7
    %v1014 = vsub.s32 1, %v1013
    %v1015 = vrot.slane %v1006, %v1014
    %1018 = vmatprep.subr.mxu0 %v973
    %1019 = vmatpush1.msra.mxu0 %v972
    %1020 = vmatprep.subr.mxu0 %v971
    %1021 = vmatpush1.msra.mxu0 %v970
    %1022 = vmatprep.subr.mxu0 %v969
    %1023 = vmatpush1.msra.mxu0 %v968
    %1024 = vmatprep.subr.mxu0 %v967
    %1025 = vmatpush1.msra.mxu0 %v966
    %1026 = vmatprep.subr.mxu0 %v965
    %1027 = vmatpush1.msra.mxu0 %v964
    %1028 = vmatprep.subr.mxu0 %v963
    %1029 = vmatpush1.msra.mxu0 %v962
    %1030 = vmatprep.subr.mxu0 %v961
    %1031 = vmatpush1.msra.mxu0 %v960
    %1032 = vmatprep.subr.mxu0 %v959
    %1033 = vmatpush1.msra.mxu0 %v958
    %1034 = vmatprep.subr.mxu0 %v957
    %1035 = vmatpush1.msra.mxu0 %v956
    %1036 = vmatprep.subr.mxu0 %v955
    %1037 = vmatpush1.msra.mxu0 %v954
    %1038 = vmatprep.subr.mxu0 %v953
    %1039 = vmatpush1.msra.mxu0 %v952
    %1040 = vmatprep.subr.mxu0 %v951
    %1041 = vmatpush1.msra.mxu0 %v950
    %1042 = vmatprep.subr.mxu0 %v949
    %1043 = vmatpush1.msra.mxu0 %v948
    %1044 = vmatprep.subr.mxu0 %v947
    %1045 = vmatpush1.msra.mxu0 %v946
    %1046 = vmatprep.subr.mxu0 %v945
    %1047 = vmatpush1.msra.mxu0 %v944
    %1048 = vmatprep.subr.mxu0 %v943
    %1049 = vmatpush1.msra.mxu0 %v942
    %1050 = vmatprep.subr.mxu0 %v1005
    %1051 = vmatpush2.msra.mxu0 %v1004
    %1052 = vmatprep.subr.mxu0 %v1003
    %1053 = vmatpush2.msra.mxu0 %v1002
    %1054 = vmatprep.subr.mxu0 %v1001
    %1055 = vmatpush2.msra.mxu0 %v1000
    %1056 = vmatprep.subr.mxu0 %v999
    %1057 = vmatpush2.msra.mxu0 %v998
    %1058 = vmatprep.subr.mxu0 %v997
    %1059 = vmatpush2.msra.mxu0 %v996
    %1060 = vmatprep.subr.mxu0 %v995
    %1061 = vmatpush2.msra.mxu0 %v994
    %1062 = vmatprep.subr.mxu0 %v993
    %1063 = vmatpush2.msra.mxu0 %v992
    %1064 = vmatprep.subr.mxu0 %v991
    %1065 = vmatpush2.msra.mxu0 %v990
    %1066 = vmatprep.subr.mxu0 %v989
    %1067 = vmatpush2.msra.mxu0 %v988
    %1068 = vmatprep.subr.mxu0 %v987
    %1069 = vmatpush2.msra.mxu0 %v986
    %1070 = vmatprep.subr.mxu0 %v985
    %1071 = vmatpush2.msra.mxu0 %v984
    %1072 = vmatprep.subr.mxu0 %v983
    %1073 = vmatpush2.msra.mxu0 %v982
    %1074 = vmatprep.subr.mxu0 %v981
    %1075 = vmatpush2.msra.mxu0 %v980
    %1076 = vmatprep.subr.mxu0 %v979
    %1077 = vmatpush2.msra.mxu0 %v978
    %1078 = vmatprep.subr.mxu0 %v977
    %1079 = vmatpush2.msra.mxu0 %v976
    %1080 = vmatprep.subr.mxu0 %v975
    %1081 = vmatpush2.msra.mxu0 %v974
    %1082 = vmatprep.mubr.f32.mxu0 %v941
    %1083 = vmatmul.mubr.f32.gmra.mxu0 %v940
    %v1084 = vpop.f32.mrf.mxu0
    %v1085 = vadd.f32 %v1011, %v1084
    %v1086 = vpop.f32.mrf.mxu0
    %v1087 = vadd.f32 %v1015, %v1086
    %1088 = vdwg.mxu0
    %v1089 = vld [vmem:[#allocation10] sm:$0xff]
    %v1090 = vld [vmem:[#allocation10 + $0x8] sm:$0xff]
    %v1091 = vld [vmem:[#allocation10 + $0x10] sm:$0xff]
    %v1092 = vld [vmem:[#allocation10 + $0x18] sm:$0xff]
    %v1093 = vld [vmem:[#allocation10 + $0x20] sm:$0xff]
    %v1094 = vld [vmem:[#allocation10 + $0x28] sm:$0xff]
    %v1095 = vld [vmem:[#allocation10 + $0x30] sm:$0xff]
    %v1096 = vld [vmem:[#allocation10 + $0x38] sm:$0xff]
    %v1097 = vld [vmem:[#allocation10 + $0x40] sm:$0xff]
    %v1098 = vld [vmem:[#allocation10 + $0x48] sm:$0xff]
    %v1099 = vld [vmem:[#allocation10 + $0x50] sm:$0xff]
    %v1100 = vld [vmem:[#allocation10 + $0x58] sm:$0xff]
    %v1101 = vld [vmem:[#allocation10 + $0x60] sm:$0xff]
    %v1102 = vld [vmem:[#allocation10 + $0x68] sm:$0xff]
    %v1103 = vld [vmem:[#allocation10 + $0x70] sm:$0xff]
    %v1104 = vld [vmem:[#allocation10 + $0x78] sm:$0xff]
    %1105 = vmatprep.subr.mxu0 0.0
    %1106 = vmatpush1.msra.mxu0 %v1104
    %1107 = vmatprep.subr.mxu0 0.0
    %1108 = vmatpush1.msra.mxu0 %v1103
    %1109 = vmatprep.subr.mxu0 0.0
    %1110 = vmatpush1.msra.mxu0 %v1102
    %1111 = vmatprep.subr.mxu0 0.0
    %1112 = vmatpush1.msra.mxu0 %v1101
    %1113 = vmatprep.subr.mxu0 0.0
    %1114 = vmatpush1.msra.mxu0 %v1100
    %1115 = vmatprep.subr.mxu0 0.0
    %1116 = vmatpush1.msra.mxu0 %v1099
    %1117 = vmatprep.subr.mxu0 0.0
    %1118 = vmatpush1.msra.mxu0 %v1098
    %1119 = vmatprep.subr.mxu0 0.0
    %1120 = vmatpush1.msra.mxu0 %v1097
    %1121 = vmatprep.subr.mxu0 0.0
    %1122 = vmatpush1.msra.mxu0 %v1096
    %1123 = vmatprep.subr.mxu0 0.0
    %1124 = vmatpush1.msra.mxu0 %v1095
    %1125 = vmatprep.subr.mxu0 0.0
    %1126 = vmatpush1.msra.mxu0 %v1094
    %1127 = vmatprep.subr.mxu0 0.0
    %1128 = vmatpush1.msra.mxu0 %v1093
    %1129 = vmatprep.subr.mxu0 0.0
    %1130 = vmatpush1.msra.mxu0 %v1092
    %1131 = vmatprep.subr.mxu0 0.0
    %1132 = vmatpush1.msra.mxu0 %v1091
    %1133 = vmatprep.subr.mxu0 0.0
    %1134 = vmatpush1.msra.mxu0 %v1090
    %1135 = vmatprep.subr.mxu0 0.0
    %1136 = vmatpush1.msra.mxu0 %v1089
    %1137 = vmatprep.subr.mxu0 0.0
    %1138 = vmatpush2.msra.mxu0 0.0
    %1139 = vmatprep.subr.mxu0 0.0
    %1140 = vmatpush2.msra.mxu0 0.0
    %1141 = vmatprep.subr.mxu0 0.0
    %1142 = vmatpush2.msra.mxu0 0.0
    %1143 = vmatprep.subr.mxu0 0.0
    %1144 = vmatpush2.msra.mxu0 0.0
    %1145 = vmatprep.subr.mxu0 0.0
    %1146 = vmatpush2.msra.mxu0 0.0
    %1147 = vmatprep.subr.mxu0 0.0
    %1148 = vmatpush2.msra.mxu0 0.0
    %1149 = vmatprep.subr.mxu0 0.0
    %1150 = vmatpush2.msra.mxu0 0.0
    %1151 = vmatprep.subr.mxu0 0.0
    %1152 = vmatpush2.msra.mxu0 0.0
    %1153 = vmatprep.subr.mxu0 0.0
    %1154 = vmatpush2.msra.mxu0 0.0
    %1155 = vmatprep.subr.mxu0 0.0
    %1156 = vmatpush2.msra.mxu0 0.0
    %1157 = vmatprep.subr.mxu0 0.0
    %1158 = vmatpush2.msra.mxu0 0.0
    %1159 = vmatprep.subr.mxu0 0.0
    %1160 = vmatpush2.msra.mxu0 0.0
    %1161 = vmatprep.subr.mxu0 0.0
    %1162 = vmatpush2.msra.mxu0 0.0
    %1163 = vmatprep.subr.mxu0 0.0
    %1164 = vmatpush2.msra.mxu0 0.0
    %1165 = vmatprep.subr.mxu0 0.0
    %1166 = vmatpush2.msra.mxu0 0.0
    %1167 = vmatprep.subr.mxu0 0.0
    %1168 = vmatpush2.msra.mxu0 0.0
    %1169 = vmatprep.mubr.f32.mxu0 0.0
    %1170 = vmatmul.mubr.f32.gmra.mxu0 %v1085
    %v1171 = vpop.f32.mrf.mxu0
    %v1172 = vadd.f32 0.0, %v1171
    %v1173 = vpop.f32.mrf.mxu0
    %1174 = vdwg.mxu0
    %v1175 = vsub.f32 %v1085, %v1172
    %v1176 = vmul.f32 %v1175, %v1175
    %1177 = vmatprep.subr.mxu0 0.0
    %1178 = vmatpush1.msra.mxu0 %v1104
    %1179 = vmatprep.subr.mxu0 0.0
    %1180 = vmatpush1.msra.mxu0 %v1103
    %1181 = vmatprep.subr.mxu0 0.0
    %1182 = vmatpush1.msra.mxu0 %v1102
    %1183 = vmatprep.subr.mxu0 0.0
    %1184 = vmatpush1.msra.mxu0 %v1101
    %1185 = vmatprep.subr.mxu0 0.0
    %1186 = vmatpush1.msra.mxu0 %v1100
    %1187 = vmatprep.subr.mxu0 0.0
    %1188 = vmatpush1.msra.mxu0 %v1099
    %1189 = vmatprep.subr.mxu0 0.0
    %1190 = vmatpush1.msra.mxu0 %v1098
    %1191 = vmatprep.subr.mxu0 0.0
    %1192 = vmatpush1.msra.mxu0 %v1097
    %1193 = vmatprep.subr.mxu0 0.0
    %1194 = vmatpush1.msra.mxu0 %v1096
    %1195 = vmatprep.subr.mxu0 0.0
    %1196 = vmatpush1.msra.mxu0 %v1095
    %1197 = vmatprep.subr.mxu0 0.0
    %1198 = vmatpush1.msra.mxu0 %v1094
    %1199 = vmatprep.subr.mxu0 0.0
    %1200 = vmatpush1.msra.mxu0 %v1093
    %1201 = vmatprep.subr.mxu0 0.0
    %1202 = vmatpush1.msra.mxu0 %v1092
    %1203 = vmatprep.subr.mxu0 0.0
    %1204 = vmatpush1.msra.mxu0 %v1091
    %1205 = vmatprep.subr.mxu0 0.0
    %1206 = vmatpush1.msra.mxu0 %v1090
    %1207 = vmatprep.subr.mxu0 0.0
    %1208 = vmatpush1.msra.mxu0 %v1089
    %1209 = vmatprep.subr.mxu0 0.0
    %1210 = vmatpush2.msra.mxu0 0.0
    %1211 = vmatprep.subr.mxu0 0.0
    %1212 = vmatpush2.msra.mxu0 0.0
    %1213 = vmatprep.subr.mxu0 0.0
    %1214 = vmatpush2.msra.mxu0 0.0
    %1215 = vmatprep.subr.mxu0 0.0
    %1216 = vmatpush2.msra.mxu0 0.0
    %1217 = vmatprep.subr.mxu0 0.0
    %1218 = vmatpush2.msra.mxu0 0.0
    %1219 = vmatprep.subr.mxu0 0.0
    %1220 = vmatpush2.msra.mxu0 0.0
    %1221 = vmatprep.subr.mxu0 0.0
    %1222 = vmatpush2.msra.mxu0 0.0
    %1223 = vmatprep.subr.mxu0 0.0
    %1224 = vmatpush2.msra.mxu0 0.0
    %1225 = vmatprep.subr.mxu0 0.0
    %1226 = vmatpush2.msra.mxu0 0.0
    %1227 = vmatprep.subr.mxu0 0.0
    %1228 = vmatpush2.msra.mxu0 0.0
    %1229 = vmatprep.subr.mxu0 0.0
    %1230 = vmatpush2.msra.mxu0 0.0
    %1231 = vmatprep.subr.mxu0 0.0
    %1232 = vmatpush2.msra.mxu0 0.0
    %1233 = vmatprep.subr.mxu0 0.0
    %1234 = vmatpush2.msra.mxu0 0.0
    %1235 = vmatprep.subr.mxu0 0.0
    %1236 = vmatpush2.msra.mxu0 0.0
    %1237 = vmatprep.subr.mxu0 0.0
    %1238 = vmatpush2.msra.mxu0 0.0
    %1239 = vmatprep.subr.mxu0 0.0
    %1240 = vmatpush2.msra.mxu0 0.0
    %1241 = vmatprep.mubr.f32.mxu0 0.0
    %1242 = vmatmul.mubr.f32.gmra.mxu0 %v1176
    %v1243 = vpop.f32.mrf.mxu0
    %v1244 = vadd.f32 1e-05, %v1243
    %v1245 = vpop.f32.mrf.mxu0
    %1246 = vdwg.mxu0
    %v1247 = vrsqrt.pop %v1244
    %v1248 = vmul.f32 %v1175, %v1247
    %vm1249 = vcmp.ge.f32.partialorder %v1248, 0.0
    %v1250 = vmul.f32 %v1248, 0.25
    %v1251 = vsel %vm1249, %v1248, %v1250
    %v1252 = vld [vmem:[%s8] sm:$0xff]
    %v1253 = vld [vmem:[%s8 + $0x8] sm:$0xff]
    %v1254 = vld [vmem:[%s8 + $0x10] sm:$0xff]
    %v1255 = vld [vmem:[%s8 + $0x18] sm:$0xff]
    %v1256 = vld [vmem:[%s8 + $0x20] sm:$0xff]
    %v1257 = vld [vmem:[%s8 + $0x28] sm:$0xff]
    %v1258 = vld [vmem:[%s8 + $0x30] sm:$0xff]
    %v1259 = vld [vmem:[%s8 + $0x38] sm:$0xff]
    %v1260 = vld [vmem:[%s8 + $0x40] sm:$0xff]
    %v1261 = vld [vmem:[%s8 + $0x48] sm:$0xff]
    %v1262 = vld [vmem:[%s8 + $0x50] sm:$0xff]
    %v1263 = vld [vmem:[%s8 + $0x58] sm:$0xff]
    %v1264 = vld [vmem:[%s8 + $0x60] sm:$0xff]
    %v1265 = vld [vmem:[%s8 + $0x68] sm:$0xff]
    %v1266 = vld [vmem:[%s8 + $0x70] sm:$0xff]
    %v1267 = vld [vmem:[%s8 + $0x78] sm:$0xff]
    %v1268 = vld [vmem:[%s9] sm:$0x1]
    %v1270 = vlaneseq
    %v1271 = vshrl.u32 %v1270, 7
    %v1272 = vsub.s32 0, %v1271
    %v1273 = vrot.slane %v1268, %v1272
    %1275 = vmatprep.subr.mxu0 0.0
    %1276 = vmatpush1.msra.mxu0 %v1267
    %1277 = vmatprep.subr.mxu0 0.0
    %1278 = vmatpush1.msra.mxu0 %v1266
    %1279 = vmatprep.subr.mxu0 0.0
    %1280 = vmatpush1.msra.mxu0 %v1265
    %1281 = vmatprep.subr.mxu0 0.0
    %1282 = vmatpush1.msra.mxu0 %v1264
    %1283 = vmatprep.subr.mxu0 0.0
    %1284 = vmatpush1.msra.mxu0 %v1263
    %1285 = vmatprep.subr.mxu0 0.0
    %1286 = vmatpush1.msra.mxu0 %v1262
    %1287 = vmatprep.subr.mxu0 0.0
    %1288 = vmatpush1.msra.mxu0 %v1261
    %1289 = vmatprep.subr.mxu0 0.0
    %1290 = vmatpush1.msra.mxu0 %v1260
    %1291 = vmatprep.subr.mxu0 0.0
    %1292 = vmatpush1.msra.mxu0 %v1259
    %1293 = vmatprep.subr.mxu0 0.0
    %1294 = vmatpush1.msra.mxu0 %v1258
    %1295 = vmatprep.subr.mxu0 0.0
    %1296 = vmatpush1.msra.mxu0 %v1257
    %1297 = vmatprep.subr.mxu0 0.0
    %1298 = vmatpush1.msra.mxu0 %v1256
    %1299 = vmatprep.subr.mxu0 0.0
    %1300 = vmatpush1.msra.mxu0 %v1255
    %1301 = vmatprep.subr.mxu0 0.0
    %1302 = vmatpush1.msra.mxu0 %v1254
    %1303 = vmatprep.subr.mxu0 0.0
    %1304 = vmatpush1.msra.mxu0 %v1253
    %1305 = vmatprep.subr.mxu0 0.0
    %1306 = vmatpush1.msra.mxu0 %v1252
    %1307 = vmatprep.subr.mxu0 0.0
    %1308 = vmatpush2.msra.mxu0 0.0
    %1309 = vmatprep.subr.mxu0 0.0
    %1310 = vmatpush2.msra.mxu0 0.0
    %1311 = vmatprep.subr.mxu0 0.0
    %1312 = vmatpush2.msra.mxu0 0.0
    %1313 = vmatprep.subr.mxu0 0.0
    %1314 = vmatpush2.msra.mxu0 0.0
    %1315 = vmatprep.subr.mxu0 0.0
    %1316 = vmatpush2.msra.mxu0 0.0
    %1317 = vmatprep.subr.mxu0 0.0
    %1318 = vmatpush2.msra.mxu0 0.0
    %1319 = vmatprep.subr.mxu0 0.0
    %1320 = vmatpush2.msra.mxu0 0.0
    %1321 = vmatprep.subr.mxu0 0.0
    %1322 = vmatpush2.msra.mxu0 0.0
    %1323 = vmatprep.subr.mxu0 0.0
    %1324 = vmatpush2.msra.mxu0 0.0
    %1325 = vmatprep.subr.mxu0 0.0
    %1326 = vmatpush2.msra.mxu0 0.0
    %1327 = vmatprep.subr.mxu0 0.0
    %1328 = vmatpush2.msra.mxu0 0.0
    %1329 = vmatprep.subr.mxu0 0.0
    %1330 = vmatpush2.msra.mxu0 0.0
    %1331 = vmatprep.subr.mxu0 0.0
    %1332 = vmatpush2.msra.mxu0 0.0
    %1333 = vmatprep.subr.mxu0 0.0
    %1334 = vmatpush2.msra.mxu0 0.0
    %1335 = vmatprep.subr.mxu0 0.0
    %1336 = vmatpush2.msra.mxu0 0.0
    %1337 = vmatprep.subr.mxu0 0.0
    %1338 = vmatpush2.msra.mxu0 0.0
    %1339 = vmatprep.mubr.f32.mxu0 0.0
    %1340 = vmatmul.mubr.f32.gmra.mxu0 %v1251
    %v1341 = vpop.f32.mrf.mxu0
    %v1342 = vadd.f32 %v1273, %v1341
    %v1343 = vpop.f32.mrf.mxu0
    %1344 = vdwg.mxu0
    %v1345 = vadd.f32 %v1342, %v1087
    %v1346 = vld [vmem:[%s11] sm:$0xff]
    %v1347 = vld [vmem:[%s11 + $0x8] sm:$0xff]
    %v1348 = vld [vmem:[%s11 + $0x10] sm:$0xff]
    %v1349 = vld [vmem:[%s11 + $0x18] sm:$0xff]
    %v1350 = vld [vmem:[%s11 + $0x20] sm:$0xff]
    %v1351 = vld [vmem:[%s11 + $0x28] sm:$0xff]
    %v1352 = vld [vmem:[%s11 + $0x30] sm:$0xff]
    %v1353 = vld [vmem:[%s11 + $0x38] sm:$0xff]
    %v1354 = vld [vmem:[%s11 + $0x40] sm:$0xff]
    %v1355 = vld [vmem:[%s11 + $0x48] sm:$0xff]
    %v1356 = vld [vmem:[%s11 + $0x50] sm:$0xff]
    %v1357 = vld [vmem:[%s11 + $0x58] sm:$0xff]
    %v1358 = vld [vmem:[%s11 + $0x60] sm:$0xff]
    %v1359 = vld [vmem:[%s11 + $0x68] sm:$0xff]
    %v1360 = vld [vmem:[%s11 + $0x70] sm:$0xff]
    %v1361 = vld [vmem:[%s11 + $0x78] sm:$0xff]
    %v1362 = vld [vmem:[%s12] sm:$0x1]
    %v1364 = vlaneseq
    %v1365 = vshrl.u32 %v1364, 7
    %v1366 = vsub.s32 0, %v1365
    %v1367 = vrot.slane %v1362, %v1366
    %1369 = vmatprep.subr.mxu0 0.0
    %1370 = vmatpush1.msra.mxu0 %v1361
    %1371 = vmatprep.subr.mxu0 0.0
    %1372 = vmatpush1.msra.mxu0 %v1360
    %1373 = vmatprep.subr.mxu0 0.0
    %1374 = vmatpush1.msra.mxu0 %v1359
    %1375 = vmatprep.subr.mxu0 0.0
    %1376 = vmatpush1.msra.mxu0 %v1358
    %1377 = vmatprep.subr.mxu0 0.0
    %1378 = vmatpush1.msra.mxu0 %v1357
    %1379 = vmatprep.subr.mxu0 0.0
    %1380 = vmatpush1.msra.mxu0 %v1356
    %1381 = vmatprep.subr.mxu0 0.0
    %1382 = vmatpush1.msra.mxu0 %v1355
    %1383 = vmatprep.subr.mxu0 0.0
    %1384 = vmatpush1.msra.mxu0 %v1354
    %1385 = vmatprep.subr.mxu0 0.0
    %1386 = vmatpush1.msra.mxu0 %v1353
    %1387 = vmatprep.subr.mxu0 0.0
    %1388 = vmatpush1.msra.mxu0 %v1352
    %1389 = vmatprep.subr.mxu0 0.0
    %1390 = vmatpush1.msra.mxu0 %v1351
    %1391 = vmatprep.subr.mxu0 0.0
    %1392 = vmatpush1.msra.mxu0 %v1350
    %1393 = vmatprep.subr.mxu0 0.0
    %1394 = vmatpush1.msra.mxu0 %v1349
    %1395 = vmatprep.subr.mxu0 0.0
    %1396 = vmatpush1.msra.mxu0 %v1348
    %1397 = vmatprep.subr.mxu0 0.0
    %1398 = vmatpush1.msra.mxu0 %v1347
    %1399 = vmatprep.subr.mxu0 0.0
    %1400 = vmatpush1.msra.mxu0 %v1346
    %1401 = vmatprep.subr.mxu0 0.0
    %1402 = vmatpush2.msra.mxu0 0.0
    %1403 = vmatprep.subr.mxu0 0.0
    %1404 = vmatpush2.msra.mxu0 0.0
    %1405 = vmatprep.subr.mxu0 0.0
    %1406 = vmatpush2.msra.mxu0 0.0
    %1407 = vmatprep.subr.mxu0 0.0
    %1408 = vmatpush2.msra.mxu0 0.0
    %1409 = vmatprep.subr.mxu0 0.0
    %1410 = vmatpush2.msra.mxu0 0.0
    %1411 = vmatprep.subr.mxu0 0.0
    %1412 = vmatpush2.msra.mxu0 0.0
    %1413 = vmatprep.subr.mxu0 0.0
    %1414 = vmatpush2.msra.mxu0 0.0
    %1415 = vmatprep.subr.mxu0 0.0
    %1416 = vmatpush2.msra.mxu0 0.0
    %1417 = vmatprep.subr.mxu0 0.0
    %1418 = vmatpush2.msra.mxu0 0.0
    %1419 = vmatprep.subr.mxu0 0.0
    %1420 = vmatpush2.msra.mxu0 0.0
    %1421 = vmatprep.subr.mxu0 0.0
    %1422 = vmatpush2.msra.mxu0 0.0
    %1423 = vmatprep.subr.mxu0 0.0
    %1424 = vmatpush2.msra.mxu0 0.0
    %1425 = vmatprep.subr.mxu0 0.0
    %1426 = vmatpush2.msra.mxu0 0.0
    %1427 = vmatprep.subr.mxu0 0.0
    %1428 = vmatpush2.msra.mxu0 0.0
    %1429 = vmatprep.subr.mxu0 0.0
    %1430 = vmatpush2.msra.mxu0 0.0
    %1431 = vmatprep.subr.mxu0 0.0
    %1432 = vmatpush2.msra.mxu0 0.0
    %1433 = vmatprep.mubr.f32.mxu0 0.0
    %1434 = vmatmul.mubr.f32.gmra.mxu0 %v1345
    %v1435 = vpop.f32.mrf.mxu0
    %v1436 = vadd.f32 %v1367, %v1435
    %v1437 = vpop.f32.mrf.mxu0
    %1438 = vdwg.mxu0
    %vm1439 = vcmask 9216
    %1440 = vst.msk [vmem:[#allocation11] sm:$0x3] %vm1439, %v1436
    // Predicated region
    $region74: #{tpu_custom_call.1} parent=1 // pred_check
      _
    $region75: #{tpu_custom_call.1} parent=1 // pred_check_branch
      %1442 = sbr.rel (0) target = $region77
    $region76: #{tpu_custom_call.1} parent=1 // pred_region
      %s1444 = ssub.s32 32, 32
      %1445 = vsyncadd [#allocation4], %s1444
      %s1447 = sshll.u32 [#allocation11], 4
      %s1448 = int_to_ptr.vmem [resolvable:$true] %s1447
      %1450 = dma.vmem_to_hbm [thread:$0]  %s1448, 32, %s13, [#allocation4]
    $region77: #{tpu_custom_call.1} parent=1 // pred_fallthru
      _
    // Predicated region
    $region78: #{tpu_custom_call.1} parent=1 // pred_check
      _
    $region79: #{tpu_custom_call.1} parent=1 // pred_check_branch
      %1452 = sbr.rel (0) target = $region81
    $region80: #{tpu_custom_call.1} parent=1 // pred_region
      %1453 = dma.done [#allocation4], 32
    $region81: #{tpu_custom_call.1} parent=1 // pred_fallthru
      _
    %1454 = vsyncpa [#allocation3], 1
    %1455 = vsyncpa [#allocation6], 1
    %1456 = vsyncpa [#allocation9], 1
    %1457 = vsyncpa [#allocation4], 1

</llo_original>
